<compile_context>
chip_gen: v7x
topology: tpu7x:2x2x1
jax: 0.10.0
libtpu: 0.0.40
codegen_flags: <defaults>
</compile_context>

<pallas_src>
import jax
import jax.numpy as jnp
from jax import lax
from jax.experimental import pallas as pl
from jax.experimental.pallas import tpu as pltpu

BN_EPS = 1e-5


def _linear(x, w_ref, b_ref):
    # y = x @ W^T + b.  Weights are stored pre-transposed to [in, out] and
    # arrive in VMEM as bf16 (HBM traffic halved); upcast in-register and
    # accumulate in f32.
    w = w_ref[...].astype(jnp.float32)
    return jnp.dot(x, w, preferred_element_type=jnp.float32) + b_ref[...]


def _bn_silu(x, gamma_ref, beta_ref):
    # BatchNorm1d in training mode (biased batch statistics) followed by SiLU.
    # Single-pass statistics: var = E[x^2] - mean^2 (one read + one reduction
    # pair instead of two full passes over the activation).
    inv_n = 1.0 / x.shape[0]
    s = jnp.sum(x, axis=0, keepdims=True)
    s2 = jnp.sum(x * x, axis=0, keepdims=True)
    mean = s * inv_n
    var = s2 * inv_n - mean * mean
    y = (x - mean) * lax.rsqrt(var + BN_EPS) * gamma_ref[...] + beta_ref[...]
    return y * jax.nn.sigmoid(y)  # SiLU


def encoder_kernel(
    x_ref,
    w1_ref, b1_ref, g1_ref, be1_ref,
    w2_ref, b2_ref, g2_ref, be2_ref,
    w3_ref, b3_ref, g3_ref, be3_ref,
    w4_ref, b4_ref, g4_ref, be4_ref,
    w5_ref, b5_ref,
    noise_ref,
    out_ref,
):
    x = x_ref[...].astype(jnp.float32)

    h = _bn_silu(_linear(x, w1_ref, b1_ref), g1_ref, be1_ref)
    h = _bn_silu(_linear(h, w2_ref, b2_ref), g2_ref, be2_ref)
    h = _bn_silu(_linear(h, w3_ref, b3_ref), g3_ref, be3_ref)
    h = _bn_silu(_linear(h, w4_ref, b4_ref), g4_ref, be4_ref)

    # Final Linear as ONE lane-dense matmul over the full output width;
    # mu/logstd are just the left/right column halves (== torch.chunk).
    y = _linear(h, w5_ref, b5_ref)               # [B, D_out]
    d_out = w5_ref.shape[1]
    half = noise_ref.shape[-1]
    mu = y[:, :half]
    logstd = y[:, half:]

    # reparameterize: z = mu + exp(logstd) * eps,  eps ~ Normal(0, 0.3)
    z = mu + jnp.exp(logstd) * noise_ref[...]

    # Single lane-dense output slab: [mu || logstd || z].
    out_ref[:, :d_out] = y
    out_ref[:, d_out:] = z


def init_encoder_params(key, unrolled_dim, hidden_dims):
    """Deterministic parameter init following nn.Linear / nn.BatchNorm1d defaults."""
    dims = [unrolled_dim] + list(hidden_dims)
    params = {}
    for i in range(5):
        fan_in, fan_out = dims[i], dims[i + 1]
        key, kw, kb = jax.random.split(key, 3)
        bound = 1.0 / jnp.sqrt(fan_in)
        # Stored pre-transposed: [in, out]
        params[f"w{i + 1}"] = jax.random.uniform(
            kw, (fan_in, fan_out), jnp.float32, -bound, bound)
        params[f"b{i + 1}"] = jax.random.uniform(
            kb, (1, fan_out), jnp.float32, -bound, bound)
    for i in range(4):
        d = dims[i + 1]
        params[f"g{i + 1}"] = jnp.ones((1, d), jnp.float32)    # BN weight default
        params[f"be{i + 1}"] = jnp.zeros((1, d), jnp.float32)  # BN bias default
    return params


@jax.jit
def encoder_forward(inputs, params, noise):
    B = inputs.shape[0]
    x = inputs.reshape(B, -1).astype(jnp.float32)  # == torch view(B, -1) on NCHW
    half = noise.shape[-1]
    d_out = params["w5"].shape[1]

    # Weights in bf16 (halves HBM->VMEM DMA, the dominant cost); biases /
    # BN affine params stay in f32 (tiny).
    def w(i):
        return params[f"w{i}"].astype(jnp.bfloat16)

    args = (
        x,
        w(1), params["b1"], params["g1"], params["be1"],
        w(2), params["b2"], params["g2"], params["be2"],
        w(3), params["b3"], params["g3"], params["be3"],
        w(4), params["b4"], params["g4"], params["be4"],
        w(5), params["b5"],
        noise,
    )

    # Advisory cost estimate so XLA schedules surrounding ops around this call.
    dims = [x.shape[1]] + [params[f"w{i}"].shape[1] for i in range(1, 6)]
    flops = 2 * B * sum(dims[i] * dims[i + 1] for i in range(5))
    transcendentals = B * (sum(dims[1:5]) + half)  # 4x sigmoid stages + exp(logstd)
    bytes_accessed = (sum(int(a.size) * a.dtype.itemsize for a in args)
                      + B * (d_out + half) * 4)

    vmem_spec = pl.BlockSpec(memory_space=pltpu.MemorySpace.VMEM)

    slab = pl.pallas_call(
        encoder_kernel,
        out_shape=jax.ShapeDtypeStruct((B, d_out + half), jnp.float32),
        in_specs=[vmem_spec] * len(args),
        out_specs=vmem_spec,
        compiler_params=pltpu.CompilerParams(vmem_limit_bytes=16 << 20),
        cost_estimate=pl.CostEstimate(
            flops=flops,
            transcendentals=transcendentals,
            bytes_accessed=bytes_accessed,
        ),
    )(*args)

    # Free XLA slices of the lane-dense slab.
    mu = slab[:, :half]
    logstd = slab[:, half:d_out]
    z = slab[:, d_out:]
    return z, mu, logstd


if __name__ == "__main__":
    # Small shapes consistent with the module: NCHW input flattened to unrolled_dim.
    B, C, H, W = 8, 4, 16, 16
    unrolled_dim = C * H * W                         # 1024
    hidden_dims = (512, 256, 256, 128, 128)          # small analogue of defaults
    half = hidden_dims[4] // 2

    key = jax.random.PRNGKey(0)
    k_in, k_par, k_noise = jax.random.split(key, 3)

    inputs = jax.random.normal(k_in, (B, C, H, W), jnp.float32)
    params = init_encoder_params(k_par, unrolled_dim, hidden_dims)
    # Normal(0, 0.3) reparameterization noise (sampled outside, consumed in-kernel
    # to keep the reference's "fresh noise per call" semantics explicit).
    noise = 0.3 * jax.random.normal(k_noise, (B, half), jnp.float32)

    z, mu, logstd = encoder_forward(inputs, params, noise)
    jax.block_until_ready((z, mu, logstd))

    assert z.shape == (B, half) and mu.shape == (B, half) and logstd.shape == (B, half)
    print("KERNEL_OK")
</pallas_src>

<mosaic_0001>
module attributes {stable_mosaic.version = 11 : i64} {
  func.func @encoder_kernel(%arg0: memref<8x1024xf32, #tpu.memory_space<vmem>>, %arg1: memref<1024x512xbf16, #tpu.memory_space<vmem>>, %arg2: memref<1x512xf32, #tpu.memory_space<vmem>>, %arg3: memref<1x512xf32, #tpu.memory_space<vmem>>, %arg4: memref<1x512xf32, #tpu.memory_space<vmem>>, %arg5: memref<512x256xbf16, #tpu.memory_space<vmem>>, %arg6: memref<1x256xf32, #tpu.memory_space<vmem>>, %arg7: memref<1x256xf32, #tpu.memory_space<vmem>>, %arg8: memref<1x256xf32, #tpu.memory_space<vmem>>, %arg9: memref<256x256xbf16, #tpu.memory_space<vmem>>, %arg10: memref<1x256xf32, #tpu.memory_space<vmem>>, %arg11: memref<1x256xf32, #tpu.memory_space<vmem>>, %arg12: memref<1x256xf32, #tpu.memory_space<vmem>>, %arg13: memref<256x128xbf16, #tpu.memory_space<vmem>>, %arg14: memref<1x128xf32, #tpu.memory_space<vmem>>, %arg15: memref<1x128xf32, #tpu.memory_space<vmem>>, %arg16: memref<1x128xf32, #tpu.memory_space<vmem>>, %arg17: memref<128x128xbf16, #tpu.memory_space<vmem>>, %arg18: memref<1x128xf32, #tpu.memory_space<vmem>>, %arg19: memref<8x64xf32, #tpu.memory_space<vmem>>, %arg20: memref<8x192xf32, #tpu.memory_space<vmem>>) attributes {dimension_semantics = [], scalar_prefetch = 0 : i64, scratch_operands = 0 : i64, tpu.core_type = #tpu.core_type<tc>} {
    %c0 = arith.constant 0 : index
    %c0_0 = arith.constant 0 : index
    %0 = vector.load %arg0[%c0, %c0_0] : memref<8x1024xf32, #tpu.memory_space<vmem>>, vector<8x1024xf32>
    %c0_1 = arith.constant 0 : index
    %c0_2 = arith.constant 0 : index
    %1 = vector.load %arg1[%c0_1, %c0_2] : memref<1024x512xbf16, #tpu.memory_space<vmem>>, vector<1024x512xbf16>
    %2 = arith.extf %1 : vector<1024x512xbf16> to vector<1024x512xf32>
    %cst = arith.constant dense<0.000000e+00> : vector<8x512xf32>
    %3 = tpu.matmul %0, %2, %cst {dimension_numbers = #tpu.dot_dimension_numbers<[1], [0], [0], [1], [0, 0, 1, 1], [], []>} : vector<8x1024xf32>, vector<1024x512xf32>, vector<8x512xf32> -> vector<8x512xf32>
    %c0_3 = arith.constant 0 : index
    %c0_4 = arith.constant 0 : index
    %4 = vector.load %arg2[%c0_3, %c0_4] : memref<1x512xf32, #tpu.memory_space<vmem>>, vector<1x512xf32>
    %5 = vector.broadcast %4 : vector<1x512xf32> to vector<8x512xf32>
    %6 = arith.addf %3, %5 : vector<8x512xf32>
    %cst_5 = arith.constant dense<0.000000e+00> : vector<512xf32>
    %7 = vector.multi_reduction <add>, %6, %cst_5 [0] : vector<8x512xf32> to vector<512xf32>
    %8 = vector.shape_cast %7 : vector<512xf32> to vector<1x512xf32>
    %9 = arith.mulf %6, %6 : vector<8x512xf32>
    %cst_6 = arith.constant dense<0.000000e+00> : vector<512xf32>
    %10 = vector.multi_reduction <add>, %9, %cst_6 [0] : vector<8x512xf32> to vector<512xf32>
    %11 = vector.shape_cast %10 : vector<512xf32> to vector<1x512xf32>
    %cst_7 = arith.constant 1.250000e-01 : f32
    %12 = vector.broadcast %cst_7 : f32 to vector<1x512xf32>
    %13 = arith.mulf %8, %12 : vector<1x512xf32>
    %cst_8 = arith.constant 1.250000e-01 : f32
    %14 = vector.broadcast %cst_8 : f32 to vector<1x512xf32>
    %15 = arith.mulf %11, %14 : vector<1x512xf32>
    %16 = arith.mulf %13, %13 : vector<1x512xf32>
    %17 = arith.subf %15, %16 : vector<1x512xf32>
    %18 = vector.broadcast %13 : vector<1x512xf32> to vector<8x512xf32>
    %19 = arith.subf %6, %18 : vector<8x512xf32>
    %cst_9 = arith.constant 9.99999974E-6 : f32
    %20 = vector.broadcast %cst_9 : f32 to vector<1x512xf32>
    %21 = arith.addf %17, %20 : vector<1x512xf32>
    %22 = math.rsqrt %21 : vector<1x512xf32>
    %23 = vector.broadcast %22 : vector<1x512xf32> to vector<8x512xf32>
    %24 = arith.mulf %19, %23 : vector<8x512xf32>
    %c0_10 = arith.constant 0 : index
    %c0_11 = arith.constant 0 : index
    %25 = vector.load %arg3[%c0_10, %c0_11] : memref<1x512xf32, #tpu.memory_space<vmem>>, vector<1x512xf32>
    %26 = vector.broadcast %25 : vector<1x512xf32> to vector<8x512xf32>
    %27 = arith.mulf %24, %26 : vector<8x512xf32>
    %c0_12 = arith.constant 0 : index
    %c0_13 = arith.constant 0 : index
    %28 = vector.load %arg4[%c0_12, %c0_13] : memref<1x512xf32, #tpu.memory_space<vmem>>, vector<1x512xf32>
    %29 = vector.broadcast %28 : vector<1x512xf32> to vector<8x512xf32>
    %30 = arith.addf %27, %29 : vector<8x512xf32>
    %31 = arith.negf %30 : vector<8x512xf32>
    %32 = math.exp %31 : vector<8x512xf32>
    %cst_14 = arith.constant 1.000000e+00 : f32
    %33 = vector.broadcast %cst_14 : f32 to vector<8x512xf32>
    %34 = arith.addf %33, %32 : vector<8x512xf32>
    %35 = arith.divf %33, %34 : vector<8x512xf32>
    %36 = arith.mulf %30, %35 : vector<8x512xf32>
    %c0_15 = arith.constant 0 : index
    %c0_16 = arith.constant 0 : index
    %37 = vector.load %arg5[%c0_15, %c0_16] : memref<512x256xbf16, #tpu.memory_space<vmem>>, vector<512x256xbf16>
    %38 = arith.extf %37 : vector<512x256xbf16> to vector<512x256xf32>
    %cst_17 = arith.constant dense<0.000000e+00> : vector<8x256xf32>
    %39 = tpu.matmul %36, %38, %cst_17 {dimension_numbers = #tpu.dot_dimension_numbers<[1], [0], [0], [1], [0, 0, 1, 1], [], []>} : vector<8x512xf32>, vector<512x256xf32>, vector<8x256xf32> -> vector<8x256xf32>
    %c0_18 = arith.constant 0 : index
    %c0_19 = arith.constant 0 : index
    %40 = vector.load %arg6[%c0_18, %c0_19] : memref<1x256xf32, #tpu.memory_space<vmem>>, vector<1x256xf32>
    %41 = vector.broadcast %40 : vector<1x256xf32> to vector<8x256xf32>
    %42 = arith.addf %39, %41 : vector<8x256xf32>
    %cst_20 = arith.constant dense<0.000000e+00> : vector<256xf32>
    %43 = vector.multi_reduction <add>, %42, %cst_20 [0] : vector<8x256xf32> to vector<256xf32>
    %44 = vector.shape_cast %43 : vector<256xf32> to vector<1x256xf32>
    %45 = arith.mulf %42, %42 : vector<8x256xf32>
    %cst_21 = arith.constant dense<0.000000e+00> : vector<256xf32>
    %46 = vector.multi_reduction <add>, %45, %cst_21 [0] : vector<8x256xf32> to vector<256xf32>
    %47 = vector.shape_cast %46 : vector<256xf32> to vector<1x256xf32>
    %cst_22 = arith.constant 1.250000e-01 : f32
    %48 = vector.broadcast %cst_22 : f32 to vector<1x256xf32>
    %49 = arith.mulf %44, %48 : vector<1x256xf32>
    %cst_23 = arith.constant 1.250000e-01 : f32
    %50 = vector.broadcast %cst_23 : f32 to vector<1x256xf32>
    %51 = arith.mulf %47, %50 : vector<1x256xf32>
    %52 = arith.mulf %49, %49 : vector<1x256xf32>
    %53 = arith.subf %51, %52 : vector<1x256xf32>
    %54 = vector.broadcast %49 : vector<1x256xf32> to vector<8x256xf32>
    %55 = arith.subf %42, %54 : vector<8x256xf32>
    %cst_24 = arith.constant 9.99999974E-6 : f32
    %56 = vector.broadcast %cst_24 : f32 to vector<1x256xf32>
    %57 = arith.addf %53, %56 : vector<1x256xf32>
    %58 = math.rsqrt %57 : vector<1x256xf32>
    %59 = vector.broadcast %58 : vector<1x256xf32> to vector<8x256xf32>
    %60 = arith.mulf %55, %59 : vector<8x256xf32>
    %c0_25 = arith.constant 0 : index
    %c0_26 = arith.constant 0 : index
    %61 = vector.load %arg7[%c0_25, %c0_26] : memref<1x256xf32, #tpu.memory_space<vmem>>, vector<1x256xf32>
    %62 = vector.broadcast %61 : vector<1x256xf32> to vector<8x256xf32>
    %63 = arith.mulf %60, %62 : vector<8x256xf32>
    %c0_27 = arith.constant 0 : index
    %c0_28 = arith.constant 0 : index
    %64 = vector.load %arg8[%c0_27, %c0_28] : memref<1x256xf32, #tpu.memory_space<vmem>>, vector<1x256xf32>
    %65 = vector.broadcast %64 : vector<1x256xf32> to vector<8x256xf32>
    %66 = arith.addf %63, %65 : vector<8x256xf32>
    %67 = arith.negf %66 : vector<8x256xf32>
    %68 = math.exp %67 : vector<8x256xf32>
    %cst_29 = arith.constant 1.000000e+00 : f32
    %69 = vector.broadcast %cst_29 : f32 to vector<8x256xf32>
    %70 = arith.addf %69, %68 : vector<8x256xf32>
    %71 = arith.divf %69, %70 : vector<8x256xf32>
    %72 = arith.mulf %66, %71 : vector<8x256xf32>
    %c0_30 = arith.constant 0 : index
    %c0_31 = arith.constant 0 : index
    %73 = vector.load %arg9[%c0_30, %c0_31] : memref<256x256xbf16, #tpu.memory_space<vmem>>, vector<256x256xbf16>
    %74 = arith.extf %73 : vector<256x256xbf16> to vector<256x256xf32>
    %cst_32 = arith.constant dense<0.000000e+00> : vector<8x256xf32>
    %75 = tpu.matmul %72, %74, %cst_32 {dimension_numbers = #tpu.dot_dimension_numbers<[1], [0], [0], [1], [0, 0, 1, 1], [], []>} : vector<8x256xf32>, vector<256x256xf32>, vector<8x256xf32> -> vector<8x256xf32>
    %c0_33 = arith.constant 0 : index
    %c0_34 = arith.constant 0 : index
    %76 = vector.load %arg10[%c0_33, %c0_34] : memref<1x256xf32, #tpu.memory_space<vmem>>, vector<1x256xf32>
    %77 = vector.broadcast %76 : vector<1x256xf32> to vector<8x256xf32>
    %78 = arith.addf %75, %77 : vector<8x256xf32>
    %cst_35 = arith.constant dense<0.000000e+00> : vector<256xf32>
    %79 = vector.multi_reduction <add>, %78, %cst_35 [0] : vector<8x256xf32> to vector<256xf32>
    %80 = vector.shape_cast %79 : vector<256xf32> to vector<1x256xf32>
    %81 = arith.mulf %78, %78 : vector<8x256xf32>
    %cst_36 = arith.constant dense<0.000000e+00> : vector<256xf32>
    %82 = vector.multi_reduction <add>, %81, %cst_36 [0] : vector<8x256xf32> to vector<256xf32>
    %83 = vector.shape_cast %82 : vector<256xf32> to vector<1x256xf32>
    %cst_37 = arith.constant 1.250000e-01 : f32
    %84 = vector.broadcast %cst_37 : f32 to vector<1x256xf32>
    %85 = arith.mulf %80, %84 : vector<1x256xf32>
    %cst_38 = arith.constant 1.250000e-01 : f32
    %86 = vector.broadcast %cst_38 : f32 to vector<1x256xf32>
    %87 = arith.mulf %83, %86 : vector<1x256xf32>
    %88 = arith.mulf %85, %85 : vector<1x256xf32>
    %89 = arith.subf %87, %88 : vector<1x256xf32>
    %90 = vector.broadcast %85 : vector<1x256xf32> to vector<8x256xf32>
    %91 = arith.subf %78, %90 : vector<8x256xf32>
    %cst_39 = arith.constant 9.99999974E-6 : f32
    %92 = vector.broadcast %cst_39 : f32 to vector<1x256xf32>
    %93 = arith.addf %89, %92 : vector<1x256xf32>
    %94 = math.rsqrt %93 : vector<1x256xf32>
    %95 = vector.broadcast %94 : vector<1x256xf32> to vector<8x256xf32>
    %96 = arith.mulf %91, %95 : vector<8x256xf32>
    %c0_40 = arith.constant 0 : index
    %c0_41 = arith.constant 0 : index
    %97 = vector.load %arg11[%c0_40, %c0_41] : memref<1x256xf32, #tpu.memory_space<vmem>>, vector<1x256xf32>
    %98 = vector.broadcast %97 : vector<1x256xf32> to vector<8x256xf32>
    %99 = arith.mulf %96, %98 : vector<8x256xf32>
    %c0_42 = arith.constant 0 : index
    %c0_43 = arith.constant 0 : index
    %100 = vector.load %arg12[%c0_42, %c0_43] : memref<1x256xf32, #tpu.memory_space<vmem>>, vector<1x256xf32>
    %101 = vector.broadcast %100 : vector<1x256xf32> to vector<8x256xf32>
    %102 = arith.addf %99, %101 : vector<8x256xf32>
    %103 = arith.negf %102 : vector<8x256xf32>
    %104 = math.exp %103 : vector<8x256xf32>
    %cst_44 = arith.constant 1.000000e+00 : f32
    %105 = vector.broadcast %cst_44 : f32 to vector<8x256xf32>
    %106 = arith.addf %105, %104 : vector<8x256xf32>
    %107 = arith.divf %105, %106 : vector<8x256xf32>
    %108 = arith.mulf %102, %107 : vector<8x256xf32>
    %c0_45 = arith.constant 0 : index
    %c0_46 = arith.constant 0 : index
    %109 = vector.load %arg13[%c0_45, %c0_46] : memref<256x128xbf16, #tpu.memory_space<vmem>>, vector<256x128xbf16>
    %110 = arith.extf %109 : vector<256x128xbf16> to vector<256x128xf32>
    %cst_47 = arith.constant dense<0.000000e+00> : vector<8x128xf32>
    %111 = tpu.matmul %108, %110, %cst_47 {dimension_numbers = #tpu.dot_dimension_numbers<[1], [0], [0], [1], [0, 0, 1, 1], [], []>} : vector<8x256xf32>, vector<256x128xf32>, vector<8x128xf32> -> vector<8x128xf32>
    %c0_48 = arith.constant 0 : index
    %c0_49 = arith.constant 0 : index
    %112 = vector.load %arg14[%c0_48, %c0_49] : memref<1x128xf32, #tpu.memory_space<vmem>>, vector<1x128xf32>
    %113 = vector.broadcast %112 : vector<1x128xf32> to vector<8x128xf32>
    %114 = arith.addf %111, %113 : vector<8x128xf32>
    %cst_50 = arith.constant dense<0.000000e+00> : vector<128xf32>
    %115 = vector.multi_reduction <add>, %114, %cst_50 [0] : vector<8x128xf32> to vector<128xf32>
    %116 = vector.shape_cast %115 : vector<128xf32> to vector<1x128xf32>
    %117 = arith.mulf %114, %114 : vector<8x128xf32>
    %cst_51 = arith.constant dense<0.000000e+00> : vector<128xf32>
    %118 = vector.multi_reduction <add>, %117, %cst_51 [0] : vector<8x128xf32> to vector<128xf32>
    %119 = vector.shape_cast %118 : vector<128xf32> to vector<1x128xf32>
    %cst_52 = arith.constant 1.250000e-01 : f32
    %120 = vector.broadcast %cst_52 : f32 to vector<1x128xf32>
    %121 = arith.mulf %116, %120 : vector<1x128xf32>
    %cst_53 = arith.constant 1.250000e-01 : f32
    %122 = vector.broadcast %cst_53 : f32 to vector<1x128xf32>
    %123 = arith.mulf %119, %122 : vector<1x128xf32>
    %124 = arith.mulf %121, %121 : vector<1x128xf32>
    %125 = arith.subf %123, %124 : vector<1x128xf32>
    %126 = vector.broadcast %121 : vector<1x128xf32> to vector<8x128xf32>
    %127 = arith.subf %114, %126 : vector<8x128xf32>
    %cst_54 = arith.constant 9.99999974E-6 : f32
    %128 = vector.broadcast %cst_54 : f32 to vector<1x128xf32>
    %129 = arith.addf %125, %128 : vector<1x128xf32>
    %130 = math.rsqrt %129 : vector<1x128xf32>
    %131 = vector.broadcast %130 : vector<1x128xf32> to vector<8x128xf32>
    %132 = arith.mulf %127, %131 : vector<8x128xf32>
    %c0_55 = arith.constant 0 : index
    %c0_56 = arith.constant 0 : index
    %133 = vector.load %arg15[%c0_55, %c0_56] : memref<1x128xf32, #tpu.memory_space<vmem>>, vector<1x128xf32>
    %134 = vector.broadcast %133 : vector<1x128xf32> to vector<8x128xf32>
    %135 = arith.mulf %132, %134 : vector<8x128xf32>
    %c0_57 = arith.constant 0 : index
    %c0_58 = arith.constant 0 : index
    %136 = vector.load %arg16[%c0_57, %c0_58] : memref<1x128xf32, #tpu.memory_space<vmem>>, vector<1x128xf32>
    %137 = vector.broadcast %136 : vector<1x128xf32> to vector<8x128xf32>
    %138 = arith.addf %135, %137 : vector<8x128xf32>
    %139 = arith.negf %138 : vector<8x128xf32>
    %140 = math.exp %139 : vector<8x128xf32>
    %cst_59 = arith.constant 1.000000e+00 : f32
    %141 = vector.broadcast %cst_59 : f32 to vector<8x128xf32>
    %142 = arith.addf %141, %140 : vector<8x128xf32>
    %143 = arith.divf %141, %142 : vector<8x128xf32>
    %144 = arith.mulf %138, %143 : vector<8x128xf32>
    %c0_60 = arith.constant 0 : index
    %c0_61 = arith.constant 0 : index
    %145 = vector.load %arg17[%c0_60, %c0_61] : memref<128x128xbf16, #tpu.memory_space<vmem>>, vector<128x128xbf16>
    %146 = arith.extf %145 : vector<128x128xbf16> to vector<128x128xf32>
    %cst_62 = arith.constant dense<0.000000e+00> : vector<8x128xf32>
    %147 = tpu.matmul %144, %146, %cst_62 {dimension_numbers = #tpu.dot_dimension_numbers<[1], [0], [0], [1], [0, 0, 1, 1], [], []>} : vector<8x128xf32>, vector<128x128xf32>, vector<8x128xf32> -> vector<8x128xf32>
    %c0_63 = arith.constant 0 : index
    %c0_64 = arith.constant 0 : index
    %148 = vector.load %arg18[%c0_63, %c0_64] : memref<1x128xf32, #tpu.memory_space<vmem>>, vector<1x128xf32>
    %149 = vector.broadcast %148 : vector<1x128xf32> to vector<8x128xf32>
    %150 = arith.addf %147, %149 : vector<8x128xf32>
    %151 = vector.extract_strided_slice %150 {offsets = [0, 0], sizes = [8, 64], strides = [1, 1]} : vector<8x128xf32> to vector<8x64xf32>
    %152 = vector.extract_strided_slice %150 {offsets = [0, 64], sizes = [8, 64], strides = [1, 1]} : vector<8x128xf32> to vector<8x64xf32>
    %153 = math.exp %152 : vector<8x64xf32>
    %c0_65 = arith.constant 0 : index
    %c0_66 = arith.constant 0 : index
    %154 = vector.load %arg19[%c0_65, %c0_66] : memref<8x64xf32, #tpu.memory_space<vmem>>, vector<8x64xf32>
    %155 = arith.mulf %153, %154 : vector<8x64xf32>
    %156 = arith.addf %151, %155 : vector<8x64xf32>
    %c0_67 = arith.constant 0 : index
    %c0_68 = arith.constant 0 : index
    %157 = vector.load %arg20[%c0_67, %c0_68] : memref<8x192xf32, #tpu.memory_space<vmem>>, vector<8x128xf32>
    tpu.vector_store %arg20[%c0_67, %c0_68], %150 {strides = array<i32>} : memref<8x192xf32, #tpu.memory_space<vmem>>, vector<8x128xf32>,
    %c0_69 = arith.constant 0 : index
    %c128 = arith.constant 128 : index
    %158 = vector.load %arg20[%c0_69, %c128] : memref<8x192xf32, #tpu.memory_space<vmem>>, vector<8x64xf32>
    tpu.vector_store %arg20[%c0_69, %c128], %156 {strides = array<i32>} : memref<8x192xf32, #tpu.memory_space<vmem>>, vector<8x64xf32>,
    return
  }
}

</mosaic_0001>

<llo_original>
// kernel: encoder_forward.1
$region0: #{encoder_forward.1}
  #allocation0 [shape = 'u32[]', space=smem, size = 0x4, offset = 0x4, fixed_abs, tag = 'smem constant byte address 0x4 - core index']
  #allocation1 [shape = 'u32[144,128]{1,0:T(1,128)}', space=vmem, size = 0x12000, scoped, tag = 'internal scratch']
  %s0 = inlined_call_operand.vmem [shape: f32[8,1024], index: 0, kind: input, shape index: {}]
  %s1 = inlined_call_operand.vmem [shape: bf16[1024,512], index: 1, kind: input, shape index: {}]
  %s2 = inlined_call_operand.vmem [shape: f32[1,512], index: 2, kind: input, shape index: {}]
  %s3 = inlined_call_operand.vmem [shape: f32[1,512], index: 3, kind: input, shape index: {}]
  %s4 = inlined_call_operand.vmem [shape: f32[1,512], index: 4, kind: input, shape index: {}]
  %s5 = inlined_call_operand.vmem [shape: bf16[512,256], index: 5, kind: input, shape index: {}]
  %s6 = inlined_call_operand.vmem [shape: f32[1,256], index: 6, kind: input, shape index: {}]
  %s7 = inlined_call_operand.vmem [shape: f32[1,256], index: 7, kind: input, shape index: {}]
  %s8 = inlined_call_operand.vmem [shape: f32[1,256], index: 8, kind: input, shape index: {}]
  %s9 = inlined_call_operand.vmem [shape: bf16[256,256], index: 9, kind: input, shape index: {}]
  %s10 = inlined_call_operand.vmem [shape: f32[1,256], index: 10, kind: input, shape index: {}]
  %s11 = inlined_call_operand.vmem [shape: f32[1,256], index: 11, kind: input, shape index: {}]
  %s12 = inlined_call_operand.vmem [shape: f32[1,256], index: 12, kind: input, shape index: {}]
  %s13 = inlined_call_operand.vmem [shape: bf16[256,128], index: 13, kind: input, shape index: {}]
  %s14 = inlined_call_operand.vmem [shape: f32[1,128], index: 14, kind: input, shape index: {}]
  %s15 = inlined_call_operand.vmem [shape: f32[1,128], index: 15, kind: input, shape index: {}]
  %s16 = inlined_call_operand.vmem [shape: f32[1,128], index: 16, kind: input, shape index: {}]
  %s17 = inlined_call_operand.vmem [shape: bf16[128,128], index: 17, kind: input, shape index: {}]
  %s18 = inlined_call_operand.vmem [shape: f32[1,128], index: 18, kind: input, shape index: {}]
  %s19 = inlined_call_operand.vmem [shape: f32[8,64], index: 19, kind: input, shape index: {}]
  %s20 = inlined_call_operand.vmem [shape: f32[8,192], index: 20, kind: output, shape index: {}]
  %s21 = sld [smem:[#allocation0]]
  $region90: #{encoder_forward.1} parent=0
    _
  %s23 = ssub.s32 1, %s21
  %s24 = scalar_select 0, %s23, %s21
  // Predicated region
  $region2: #{encoder_forward.1} parent=0 // pred_check
    _
  $region3: #{encoder_forward.1} parent=0 // pred_check_branch
    %26 = sbr.rel (0) target = $region5
  $region4: #{encoder_forward.1} parent=0 // pred_region
    _
  $region5: #{encoder_forward.1} parent=0 // pred_fallthru
    _
  // Predicated region
  $region6: #{encoder_forward.1} parent=0 // pred_check
    _
  $region7: #{encoder_forward.1} parent=0 // pred_check_branch
    %28 = sbr.rel (0) target = $region9
  $region8: #{encoder_forward.1} parent=0 // pred_region
    _
  $region9: #{encoder_forward.1} parent=0 // pred_fallthru
    _
  // Predicated region
  $region10: #{encoder_forward.1} parent=0 // pred_check
    _
  $region11: #{encoder_forward.1} parent=0 // pred_check_branch
    %30 = sbr.rel (0) target = $region13
  $region12: #{encoder_forward.1} parent=0 // pred_region
    _
  $region13: #{encoder_forward.1} parent=0 // pred_fallthru
    _
  // Predicated region
  $region14: #{encoder_forward.1} parent=0 // pred_check
    _
  $region15: #{encoder_forward.1} parent=0 // pred_check_branch
    %32 = sbr.rel (0) target = $region17
  $region16: #{encoder_forward.1} parent=0 // pred_region
    _
  $region17: #{encoder_forward.1} parent=0 // pred_fallthru
    _
  // Predicated region
  $region18: #{encoder_forward.1} parent=0 // pred_check
    _
  $region19: #{encoder_forward.1} parent=0 // pred_check_branch
    %34 = sbr.rel (0) target = $region21
  $region20: #{encoder_forward.1} parent=0 // pred_region
    _
  $region21: #{encoder_forward.1} parent=0 // pred_fallthru
    _
  // Predicated region
  $region22: #{encoder_forward.1} parent=0 // pred_check
    _
  $region23: #{encoder_forward.1} parent=0 // pred_check_branch
    %36 = sbr.rel (0) target = $region25
  $region24: #{encoder_forward.1} parent=0 // pred_region
    _
  $region25: #{encoder_forward.1} parent=0 // pred_fallthru
    _
  // Predicated region
  $region26: #{encoder_forward.1} parent=0 // pred_check
    _
  $region27: #{encoder_forward.1} parent=0 // pred_check_branch
    %38 = sbr.rel (0) target = $region29
  $region28: #{encoder_forward.1} parent=0 // pred_region
    _
  $region29: #{encoder_forward.1} parent=0 // pred_fallthru
    _
  // Predicated region
  $region30: #{encoder_forward.1} parent=0 // pred_check
    _
  $region31: #{encoder_forward.1} parent=0 // pred_check_branch
    %40 = sbr.rel (0) target = $region33
  $region32: #{encoder_forward.1} parent=0 // pred_region
    _
  $region33: #{encoder_forward.1} parent=0 // pred_fallthru
    _
  // Predicated region
  $region34: #{encoder_forward.1} parent=0 // pred_check
    _
  $region35: #{encoder_forward.1} parent=0 // pred_check_branch
    %42 = sbr.rel (0) target = $region37
  $region36: #{encoder_forward.1} parent=0 // pred_region
    _
  $region37: #{encoder_forward.1} parent=0 // pred_fallthru
    _
  // Predicated region
  $region38: #{encoder_forward.1} parent=0 // pred_check
    _
  $region39: #{encoder_forward.1} parent=0 // pred_check_branch
    %44 = sbr.rel (0) target = $region41
  $region40: #{encoder_forward.1} parent=0 // pred_region
    _
  $region41: #{encoder_forward.1} parent=0 // pred_fallthru
    _
  // Predicated region
  $region42: #{encoder_forward.1} parent=0 // pred_check
    _
  $region43: #{encoder_forward.1} parent=0 // pred_check_branch
    %46 = sbr.rel (0) target = $region45
  $region44: #{encoder_forward.1} parent=0 // pred_region
    _
  $region45: #{encoder_forward.1} parent=0 // pred_fallthru
    _
  // Predicated region
  $region46: #{encoder_forward.1} parent=0 // pred_check
    _
  $region47: #{encoder_forward.1} parent=0 // pred_check_branch
    %48 = sbr.rel (0) target = $region49
  $region48: #{encoder_forward.1} parent=0 // pred_region
    _
  $region49: #{encoder_forward.1} parent=0 // pred_fallthru
    _
  // Predicated region
  $region50: #{encoder_forward.1} parent=0 // pred_check
    _
  $region51: #{encoder_forward.1} parent=0 // pred_check_branch
    %50 = sbr.rel (0) target = $region53
  $region52: #{encoder_forward.1} parent=0 // pred_region
    _
  $region53: #{encoder_forward.1} parent=0 // pred_fallthru
    _
  // Predicated region
  $region54: #{encoder_forward.1} parent=0 // pred_check
    _
  $region55: #{encoder_forward.1} parent=0 // pred_check_branch
    %52 = sbr.rel (0) target = $region57
  $region56: #{encoder_forward.1} parent=0 // pred_region
    _
  $region57: #{encoder_forward.1} parent=0 // pred_fallthru
    _
  // Predicated region
  $region58: #{encoder_forward.1} parent=0 // pred_check
    _
  $region59: #{encoder_forward.1} parent=0 // pred_check_branch
    %54 = sbr.rel (0) target = $region61
  $region60: #{encoder_forward.1} parent=0 // pred_region
    _
  $region61: #{encoder_forward.1} parent=0 // pred_fallthru
    _
  // Predicated region
  $region62: #{encoder_forward.1} parent=0 // pred_check
    _
  $region63: #{encoder_forward.1} parent=0 // pred_check_branch
    %56 = sbr.rel (0) target = $region65
  $region64: #{encoder_forward.1} parent=0 // pred_region
    _
  $region65: #{encoder_forward.1} parent=0 // pred_fallthru
    _
  // Predicated region
  $region66: #{encoder_forward.1} parent=0 // pred_check
    _
  $region67: #{encoder_forward.1} parent=0 // pred_check_branch
    %58 = sbr.rel (0) target = $region69
  $region68: #{encoder_forward.1} parent=0 // pred_region
    _
  $region69: #{encoder_forward.1} parent=0 // pred_fallthru
    _
  // Predicated region
  $region70: #{encoder_forward.1} parent=0 // pred_check
    _
  $region71: #{encoder_forward.1} parent=0 // pred_check_branch
    %60 = sbr.rel (0) target = $region73
  $region72: #{encoder_forward.1} parent=0 // pred_region
    _
  $region73: #{encoder_forward.1} parent=0 // pred_fallthru
    _
  // Predicated region
  $region74: #{encoder_forward.1} parent=0 // pred_check
    _
  $region75: #{encoder_forward.1} parent=0 // pred_check_branch
    %62 = sbr.rel (0) target = $region77
  $region76: #{encoder_forward.1} parent=0 // pred_region
    _
  $region77: #{encoder_forward.1} parent=0 // pred_fallthru
    _
  // Predicated region
  $region78: #{encoder_forward.1} parent=0 // pred_check
    _
  $region79: #{encoder_forward.1} parent=0 // pred_check_branch
    %64 = sbr.rel (0) target = $region81
  $region80: #{encoder_forward.1} parent=0 // pred_region
    _
  $region81: #{encoder_forward.1} parent=0 // pred_fallthru
    _
  %v65 = vld [vmem:[%s0] sm:$0xff]
  %v66 = vld [vmem:[%s0 + $0x8] sm:$0xff]
  %v67 = vld [vmem:[%s0 + $0x10] sm:$0xff]
  %v68 = vld [vmem:[%s0 + $0x18] sm:$0xff]
  %v69 = vld [vmem:[%s0 + $0x20] sm:$0xff]
  %v70 = vld [vmem:[%s0 + $0x28] sm:$0xff]
  %v71 = vld [vmem:[%s0 + $0x30] sm:$0xff]
  %v72 = vld [vmem:[%s0 + $0x38] sm:$0xff]
  %v73 = vld [vmem:[%s1] sm:$0xff]
  %v74 = vld [vmem:[%s1 + $0x8] sm:$0xff]
  %v75 = vld [vmem:[%s1 + $0x10] sm:$0xff]
  %v76 = vld [vmem:[%s1 + $0x18] sm:$0xff]
  %v77 = vld [vmem:[%s1 + $0x20] sm:$0xff]
  %v78 = vld [vmem:[%s1 + $0x28] sm:$0xff]
  %v79 = vld [vmem:[%s1 + $0x30] sm:$0xff]
  %v80 = vld [vmem:[%s1 + $0x38] sm:$0xff]
  %v81 = vld [vmem:[%s1 + $0x40] sm:$0xff]
  %v82 = vld [vmem:[%s1 + $0x48] sm:$0xff]
  %v83 = vld [vmem:[%s1 + $0x50] sm:$0xff]
  %v84 = vld [vmem:[%s1 + $0x58] sm:$0xff]
  %v85 = vld [vmem:[%s1 + $0x60] sm:$0xff]
  %v86 = vld [vmem:[%s1 + $0x68] sm:$0xff]
  %v87 = vld [vmem:[%s1 + $0x70] sm:$0xff]
  %v88 = vld [vmem:[%s1 + $0x78] sm:$0xff]
  %v89 = vld [vmem:[%s1 + $0x80] sm:$0xff]
  %v90 = vld [vmem:[%s1 + $0x88] sm:$0xff]
  %v91 = vld [vmem:[%s1 + $0x90] sm:$0xff]
  %v92 = vld [vmem:[%s1 + $0x98] sm:$0xff]
  %v93 = vld [vmem:[%s1 + $0xa0] sm:$0xff]
  %v94 = vld [vmem:[%s1 + $0xa8] sm:$0xff]
  %v95 = vld [vmem:[%s1 + $0xb0] sm:$0xff]
  %v96 = vld [vmem:[%s1 + $0xb8] sm:$0xff]
  %v97 = vld [vmem:[%s1 + $0xc0] sm:$0xff]
  %v98 = vld [vmem:[%s1 + $0xc8] sm:$0xff]
  %v99 = vld [vmem:[%s1 + $0xd0] sm:$0xff]
  %v100 = vld [vmem:[%s1 + $0xd8] sm:$0xff]
  %v101 = vld [vmem:[%s1 + $0xe0] sm:$0xff]
  %v102 = vld [vmem:[%s1 + $0xe8] sm:$0xff]
  %v103 = vld [vmem:[%s1 + $0xf0] sm:$0xff]
  %v104 = vld [vmem:[%s1 + $0xf8] sm:$0xff]
  %v105 = vld [vmem:[%s1 + $0x100] sm:$0xff]
  %v106 = vld [vmem:[%s1 + $0x108] sm:$0xff]
  %v107 = vld [vmem:[%s1 + $0x110] sm:$0xff]
  %v108 = vld [vmem:[%s1 + $0x118] sm:$0xff]
  %v109 = vld [vmem:[%s1 + $0x120] sm:$0xff]
  %v110 = vld [vmem:[%s1 + $0x128] sm:$0xff]
  %v111 = vld [vmem:[%s1 + $0x130] sm:$0xff]
  %v112 = vld [vmem:[%s1 + $0x138] sm:$0xff]
  %v113 = vld [vmem:[%s1 + $0x140] sm:$0xff]
  %v114 = vld [vmem:[%s1 + $0x148] sm:$0xff]
  %v115 = vld [vmem:[%s1 + $0x150] sm:$0xff]
  %v116 = vld [vmem:[%s1 + $0x158] sm:$0xff]
  %v117 = vld [vmem:[%s1 + $0x160] sm:$0xff]
  %v118 = vld [vmem:[%s1 + $0x168] sm:$0xff]
  %v119 = vld [vmem:[%s1 + $0x170] sm:$0xff]
  %v120 = vld [vmem:[%s1 + $0x178] sm:$0xff]
  %v121 = vld [vmem:[%s1 + $0x180] sm:$0xff]
  %v122 = vld [vmem:[%s1 + $0x188] sm:$0xff]
  %v123 = vld [vmem:[%s1 + $0x190] sm:$0xff]
  %v124 = vld [vmem:[%s1 + $0x198] sm:$0xff]
  %v125 = vld [vmem:[%s1 + $0x1a0] sm:$0xff]
  %v126 = vld [vmem:[%s1 + $0x1a8] sm:$0xff]
  %v127 = vld [vmem:[%s1 + $0x1b0] sm:$0xff]
  %v128 = vld [vmem:[%s1 + $0x1b8] sm:$0xff]
  %v129 = vld [vmem:[%s1 + $0x1c0] sm:$0xff]
  %v130 = vld [vmem:[%s1 + $0x1c8] sm:$0xff]
  %v131 = vld [vmem:[%s1 + $0x1d0] sm:$0xff]
  %v132 = vld [vmem:[%s1 + $0x1d8] sm:$0xff]
  %v133 = vld [vmem:[%s1 + $0x1e0] sm:$0xff]
  %v134 = vld [vmem:[%s1 + $0x1e8] sm:$0xff]
  %v135 = vld [vmem:[%s1 + $0x1f0] sm:$0xff]
  %v136 = vld [vmem:[%s1 + $0x1f8] sm:$0xff]
  %v137 = vld [vmem:[%s1 + $0x200] sm:$0xff]
  %v138 = vld [vmem:[%s1 + $0x208] sm:$0xff]
  %v139 = vld [vmem:[%s1 + $0x210] sm:$0xff]
  %v140 = vld [vmem:[%s1 + $0x218] sm:$0xff]
  %v141 = vld [vmem:[%s1 + $0x220] sm:$0xff]
  %v142 = vld [vmem:[%s1 + $0x228] sm:$0xff]
  %v143 = vld [vmem:[%s1 + $0x230] sm:$0xff]
  %v144 = vld [vmem:[%s1 + $0x238] sm:$0xff]
  %v145 = vld [vmem:[%s1 + $0x240] sm:$0xff]
  %v146 = vld [vmem:[%s1 + $0x248] sm:$0xff]
  %v147 = vld [vmem:[%s1 + $0x250] sm:$0xff]
  %v148 = vld [vmem:[%s1 + $0x258] sm:$0xff]
  %v149 = vld [vmem:[%s1 + $0x260] sm:$0xff]
  %v150 = vld [vmem:[%s1 + $0x268] sm:$0xff]
  %v151 = vld [vmem:[%s1 + $0x270] sm:$0xff]
  %v152 = vld [vmem:[%s1 + $0x278] sm:$0xff]
  %v153 = vld [vmem:[%s1 + $0x280] sm:$0xff]
  %v154 = vld [vmem:[%s1 + $0x288] sm:$0xff]
  %v155 = vld [vmem:[%s1 + $0x290] sm:$0xff]
  %v156 = vld [vmem:[%s1 + $0x298] sm:$0xff]
  %v157 = vld [vmem:[%s1 + $0x2a0] sm:$0xff]
  %v158 = vld [vmem:[%s1 + $0x2a8] sm:$0xff]
  %v159 = vld [vmem:[%s1 + $0x2b0] sm:$0xff]
  %v160 = vld [vmem:[%s1 + $0x2b8] sm:$0xff]
  %v161 = vld [vmem:[%s1 + $0x2c0] sm:$0xff]
  %v162 = vld [vmem:[%s1 + $0x2c8] sm:$0xff]
  %v163 = vld [vmem:[%s1 + $0x2d0] sm:$0xff]
  %v164 = vld [vmem:[%s1 + $0x2d8] sm:$0xff]
  %v165 = vld [vmem:[%s1 + $0x2e0] sm:$0xff]
  %v166 = vld [vmem:[%s1 + $0x2e8] sm:$0xff]
  %v167 = vld [vmem:[%s1 + $0x2f0] sm:$0xff]
  %v168 = vld [vmem:[%s1 + $0x2f8] sm:$0xff]
  %v169 = vld [vmem:[%s1 + $0x300] sm:$0xff]
  %v170 = vld [vmem:[%s1 + $0x308] sm:$0xff]
  %v171 = vld [vmem:[%s1 + $0x310] sm:$0xff]
  %v172 = vld [vmem:[%s1 + $0x318] sm:$0xff]
  %v173 = vld [vmem:[%s1 + $0x320] sm:$0xff]
  %v174 = vld [vmem:[%s1 + $0x328] sm:$0xff]
  %v175 = vld [vmem:[%s1 + $0x330] sm:$0xff]
  %v176 = vld [vmem:[%s1 + $0x338] sm:$0xff]
  %v177 = vld [vmem:[%s1 + $0x340] sm:$0xff]
  %v178 = vld [vmem:[%s1 + $0x348] sm:$0xff]
  %v179 = vld [vmem:[%s1 + $0x350] sm:$0xff]
  %v180 = vld [vmem:[%s1 + $0x358] sm:$0xff]
  %v181 = vld [vmem:[%s1 + $0x360] sm:$0xff]
  %v182 = vld [vmem:[%s1 + $0x368] sm:$0xff]
  %v183 = vld [vmem:[%s1 + $0x370] sm:$0xff]
  %v184 = vld [vmem:[%s1 + $0x378] sm:$0xff]
  %v185 = vld [vmem:[%s1 + $0x380] sm:$0xff]
  %v186 = vld [vmem:[%s1 + $0x388] sm:$0xff]
  %v187 = vld [vmem:[%s1 + $0x390] sm:$0xff]
  %v188 = vld [vmem:[%s1 + $0x398] sm:$0xff]
  %v189 = vld [vmem:[%s1 + $0x3a0] sm:$0xff]
  %v190 = vld [vmem:[%s1 + $0x3a8] sm:$0xff]
  %v191 = vld [vmem:[%s1 + $0x3b0] sm:$0xff]
  %v192 = vld [vmem:[%s1 + $0x3b8] sm:$0xff]
  %v193 = vld [vmem:[%s1 + $0x3c0] sm:$0xff]
  %v194 = vld [vmem:[%s1 + $0x3c8] sm:$0xff]
  %v195 = vld [vmem:[%s1 + $0x3d0] sm:$0xff]
  %v196 = vld [vmem:[%s1 + $0x3d8] sm:$0xff]
  %v197 = vld [vmem:[%s1 + $0x3e0] sm:$0xff]
  %v198 = vld [vmem:[%s1 + $0x3e8] sm:$0xff]
  %v199 = vld [vmem:[%s1 + $0x3f0] sm:$0xff]
  %v200 = vld [vmem:[%s1 + $0x3f8] sm:$0xff]
  %v201 = vld [vmem:[%s1 + $0x400] sm:$0xff]
  %v202 = vld [vmem:[%s1 + $0x408] sm:$0xff]
  %v203 = vld [vmem:[%s1 + $0x410] sm:$0xff]
  %v204 = vld [vmem:[%s1 + $0x418] sm:$0xff]
  %v205 = vld [vmem:[%s1 + $0x420] sm:$0xff]
  %v206 = vld [vmem:[%s1 + $0x428] sm:$0xff]
  %v207 = vld [vmem:[%s1 + $0x430] sm:$0xff]
  %v208 = vld [vmem:[%s1 + $0x438] sm:$0xff]
  %v209 = vld [vmem:[%s1 + $0x440] sm:$0xff]
  %v210 = vld [vmem:[%s1 + $0x448] sm:$0xff]
  %v211 = vld [vmem:[%s1 + $0x450] sm:$0xff]
  %v212 = vld [vmem:[%s1 + $0x458] sm:$0xff]
  %v213 = vld [vmem:[%s1 + $0x460] sm:$0xff]
  %v214 = vld [vmem:[%s1 + $0x468] sm:$0xff]
  %v215 = vld [vmem:[%s1 + $0x470] sm:$0xff]
  %v216 = vld [vmem:[%s1 + $0x478] sm:$0xff]
  %v217 = vld [vmem:[%s1 + $0x480] sm:$0xff]
  %v218 = vld [vmem:[%s1 + $0x488] sm:$0xff]
  %v219 = vld [vmem:[%s1 + $0x490] sm:$0xff]
  %v220 = vld [vmem:[%s1 + $0x498] sm:$0xff]
  %v221 = vld [vmem:[%s1 + $0x4a0] sm:$0xff]
  %v222 = vld [vmem:[%s1 + $0x4a8] sm:$0xff]
  %v223 = vld [vmem:[%s1 + $0x4b0] sm:$0xff]
  %v224 = vld [vmem:[%s1 + $0x4b8] sm:$0xff]
  %v225 = vld [vmem:[%s1 + $0x4c0] sm:$0xff]
  %v226 = vld [vmem:[%s1 + $0x4c8] sm:$0xff]
  %v227 = vld [vmem:[%s1 + $0x4d0] sm:$0xff]
  %v228 = vld [vmem:[%s1 + $0x4d8] sm:$0xff]
  %v229 = vld [vmem:[%s1 + $0x4e0] sm:$0xff]
  %v230 = vld [vmem:[%s1 + $0x4e8] sm:$0xff]
  %v231 = vld [vmem:[%s1 + $0x4f0] sm:$0xff]
  %v232 = vld [vmem:[%s1 + $0x4f8] sm:$0xff]
  %v233 = vld [vmem:[%s1 + $0x500] sm:$0xff]
  %v234 = vld [vmem:[%s1 + $0x508] sm:$0xff]
  %v235 = vld [vmem:[%s1 + $0x510] sm:$0xff]
  %v236 = vld [vmem:[%s1 + $0x518] sm:$0xff]
  %v237 = vld [vmem:[%s1 + $0x520] sm:$0xff]
  %v238 = vld [vmem:[%s1 + $0x528] sm:$0xff]
  %v239 = vld [vmem:[%s1 + $0x530] sm:$0xff]
  %v240 = vld [vmem:[%s1 + $0x538] sm:$0xff]
  %v241 = vld [vmem:[%s1 + $0x540] sm:$0xff]
  %v242 = vld [vmem:[%s1 + $0x548] sm:$0xff]
  %v243 = vld [vmem:[%s1 + $0x550] sm:$0xff]
  %v244 = vld [vmem:[%s1 + $0x558] sm:$0xff]
  %v245 = vld [vmem:[%s1 + $0x560] sm:$0xff]
  %v246 = vld [vmem:[%s1 + $0x568] sm:$0xff]
  %v247 = vld [vmem:[%s1 + $0x570] sm:$0xff]
  %v248 = vld [vmem:[%s1 + $0x578] sm:$0xff]
  %v249 = vld [vmem:[%s1 + $0x580] sm:$0xff]
  %v250 = vld [vmem:[%s1 + $0x588] sm:$0xff]
  %v251 = vld [vmem:[%s1 + $0x590] sm:$0xff]
  %v252 = vld [vmem:[%s1 + $0x598] sm:$0xff]
  %v253 = vld [vmem:[%s1 + $0x5a0] sm:$0xff]
  %v254 = vld [vmem:[%s1 + $0x5a8] sm:$0xff]
  %v255 = vld [vmem:[%s1 + $0x5b0] sm:$0xff]
  %v256 = vld [vmem:[%s1 + $0x5b8] sm:$0xff]
  %v257 = vld [vmem:[%s1 + $0x5c0] sm:$0xff]
  %v258 = vld [vmem:[%s1 + $0x5c8] sm:$0xff]
  %v259 = vld [vmem:[%s1 + $0x5d0] sm:$0xff]
  %v260 = vld [vmem:[%s1 + $0x5d8] sm:$0xff]
  %v261 = vld [vmem:[%s1 + $0x5e0] sm:$0xff]
  %v262 = vld [vmem:[%s1 + $0x5e8] sm:$0xff]
  %v263 = vld [vmem:[%s1 + $0x5f0] sm:$0xff]
  %v264 = vld [vmem:[%s1 + $0x5f8] sm:$0xff]
  %v265 = vld [vmem:[%s1 + $0x600] sm:$0xff]
  %v266 = vld [vmem:[%s1 + $0x608] sm:$0xff]
  %v267 = vld [vmem:[%s1 + $0x610] sm:$0xff]
  %v268 = vld [vmem:[%s1 + $0x618] sm:$0xff]
  %v269 = vld [vmem:[%s1 + $0x620] sm:$0xff]
  %v270 = vld [vmem:[%s1 + $0x628] sm:$0xff]
  %v271 = vld [vmem:[%s1 + $0x630] sm:$0xff]
  %v272 = vld [vmem:[%s1 + $0x638] sm:$0xff]
  %v273 = vld [vmem:[%s1 + $0x640] sm:$0xff]
  %v274 = vld [vmem:[%s1 + $0x648] sm:$0xff]
  %v275 = vld [vmem:[%s1 + $0x650] sm:$0xff]
  %v276 = vld [vmem:[%s1 + $0x658] sm:$0xff]
  %v277 = vld [vmem:[%s1 + $0x660] sm:$0xff]
  %v278 = vld [vmem:[%s1 + $0x668] sm:$0xff]
  %v279 = vld [vmem:[%s1 + $0x670] sm:$0xff]
  %v280 = vld [vmem:[%s1 + $0x678] sm:$0xff]
  %v281 = vld [vmem:[%s1 + $0x680] sm:$0xff]
  %v282 = vld [vmem:[%s1 + $0x688] sm:$0xff]
  %v283 = vld [vmem:[%s1 + $0x690] sm:$0xff]
  %v284 = vld [vmem:[%s1 + $0x698] sm:$0xff]
  %v285 = vld [vmem:[%s1 + $0x6a0] sm:$0xff]
  %v286 = vld [vmem:[%s1 + $0x6a8] sm:$0xff]
  %v287 = vld [vmem:[%s1 + $0x6b0] sm:$0xff]
  %v288 = vld [vmem:[%s1 + $0x6b8] sm:$0xff]
  %v289 = vld [vmem:[%s1 + $0x6c0] sm:$0xff]
  %v290 = vld [vmem:[%s1 + $0x6c8] sm:$0xff]
  %v291 = vld [vmem:[%s1 + $0x6d0] sm:$0xff]
  %v292 = vld [vmem:[%s1 + $0x6d8] sm:$0xff]
  %v293 = vld [vmem:[%s1 + $0x6e0] sm:$0xff]
  %v294 = vld [vmem:[%s1 + $0x6e8] sm:$0xff]
  %v295 = vld [vmem:[%s1 + $0x6f0] sm:$0xff]
  %v296 = vld [vmem:[%s1 + $0x6f8] sm:$0xff]
  %v297 = vld [vmem:[%s1 + $0x700] sm:$0xff]
  %v298 = vld [vmem:[%s1 + $0x708] sm:$0xff]
  %v299 = vld [vmem:[%s1 + $0x710] sm:$0xff]
  %v300 = vld [vmem:[%s1 + $0x718] sm:$0xff]
  %v301 = vld [vmem:[%s1 + $0x720] sm:$0xff]
  %v302 = vld [vmem:[%s1 + $0x728] sm:$0xff]
  %v303 = vld [vmem:[%s1 + $0x730] sm:$0xff]
  %v304 = vld [vmem:[%s1 + $0x738] sm:$0xff]
  %v305 = vld [vmem:[%s1 + $0x740] sm:$0xff]
  %v306 = vld [vmem:[%s1 + $0x748] sm:$0xff]
  %v307 = vld [vmem:[%s1 + $0x750] sm:$0xff]
  %v308 = vld [vmem:[%s1 + $0x758] sm:$0xff]
  %v309 = vld [vmem:[%s1 + $0x760] sm:$0xff]
  %v310 = vld [vmem:[%s1 + $0x768] sm:$0xff]
  %v311 = vld [vmem:[%s1 + $0x770] sm:$0xff]
  %v312 = vld [vmem:[%s1 + $0x778] sm:$0xff]
  %v313 = vld [vmem:[%s1 + $0x780] sm:$0xff]
  %v314 = vld [vmem:[%s1 + $0x788] sm:$0xff]
  %v315 = vld [vmem:[%s1 + $0x790] sm:$0xff]
  %v316 = vld [vmem:[%s1 + $0x798] sm:$0xff]
  %v317 = vld [vmem:[%s1 + $0x7a0] sm:$0xff]
  %v318 = vld [vmem:[%s1 + $0x7a8] sm:$0xff]
  %v319 = vld [vmem:[%s1 + $0x7b0] sm:$0xff]
  %v320 = vld [vmem:[%s1 + $0x7b8] sm:$0xff]
  %v321 = vld [vmem:[%s1 + $0x7c0] sm:$0xff]
  %v322 = vld [vmem:[%s1 + $0x7c8] sm:$0xff]
  %v323 = vld [vmem:[%s1 + $0x7d0] sm:$0xff]
  %v324 = vld [vmem:[%s1 + $0x7d8] sm:$0xff]
  %v325 = vld [vmem:[%s1 + $0x7e0] sm:$0xff]
  %v326 = vld [vmem:[%s1 + $0x7e8] sm:$0xff]
  %v327 = vld [vmem:[%s1 + $0x7f0] sm:$0xff]
  %v328 = vld [vmem:[%s1 + $0x7f8] sm:$0xff]
  %v329 = vunpack.c.l.bf16 %v73
  %v330 = vunpack.c.h.bf16 %v73
  %v331 = vunpack.c.l.bf16 %v74
  %v332 = vunpack.c.h.bf16 %v74
  %v333 = vunpack.c.l.bf16 %v75
  %v334 = vunpack.c.h.bf16 %v75
  %v335 = vunpack.c.l.bf16 %v76
  %v336 = vunpack.c.h.bf16 %v76
  %v337 = vunpack.c.l.bf16 %v77
  %v338 = vunpack.c.h.bf16 %v77
  %v339 = vunpack.c.l.bf16 %v78
  %v340 = vunpack.c.h.bf16 %v78
  %v341 = vunpack.c.l.bf16 %v79
  %v342 = vunpack.c.h.bf16 %v79
  %v343 = vunpack.c.l.bf16 %v80
  %v344 = vunpack.c.h.bf16 %v80
  %v345 = vunpack.c.l.bf16 %v81
  %v346 = vunpack.c.h.bf16 %v81
  %v347 = vunpack.c.l.bf16 %v82
  %v348 = vunpack.c.h.bf16 %v82
  %v349 = vunpack.c.l.bf16 %v83
  %v350 = vunpack.c.h.bf16 %v83
  %v351 = vunpack.c.l.bf16 %v84
  %v352 = vunpack.c.h.bf16 %v84
  %v353 = vunpack.c.l.bf16 %v85
  %v354 = vunpack.c.h.bf16 %v85
  %v355 = vunpack.c.l.bf16 %v86
  %v356 = vunpack.c.h.bf16 %v86
  %v357 = vunpack.c.l.bf16 %v87
  %v358 = vunpack.c.h.bf16 %v87
  %v359 = vunpack.c.l.bf16 %v88
  %v360 = vunpack.c.h.bf16 %v88
  %v361 = vunpack.c.l.bf16 %v89
  %v362 = vunpack.c.h.bf16 %v89
  %v363 = vunpack.c.l.bf16 %v90
  %v364 = vunpack.c.h.bf16 %v90
  %v365 = vunpack.c.l.bf16 %v91
  %v366 = vunpack.c.h.bf16 %v91
  %v367 = vunpack.c.l.bf16 %v92
  %v368 = vunpack.c.h.bf16 %v92
  %v369 = vunpack.c.l.bf16 %v93
  %v370 = vunpack.c.h.bf16 %v93
  %v371 = vunpack.c.l.bf16 %v94
  %v372 = vunpack.c.h.bf16 %v94
  %v373 = vunpack.c.l.bf16 %v95
  %v374 = vunpack.c.h.bf16 %v95
  %v375 = vunpack.c.l.bf16 %v96
  %v376 = vunpack.c.h.bf16 %v96
  %v377 = vunpack.c.l.bf16 %v97
  %v378 = vunpack.c.h.bf16 %v97
  %v379 = vunpack.c.l.bf16 %v98
  %v380 = vunpack.c.h.bf16 %v98
  %v381 = vunpack.c.l.bf16 %v99
  %v382 = vunpack.c.h.bf16 %v99
  %v383 = vunpack.c.l.bf16 %v100
  %v384 = vunpack.c.h.bf16 %v100
  %v385 = vunpack.c.l.bf16 %v101
  %v386 = vunpack.c.h.bf16 %v101
  %v387 = vunpack.c.l.bf16 %v102
  %v388 = vunpack.c.h.bf16 %v102
  %v389 = vunpack.c.l.bf16 %v103
  %v390 = vunpack.c.h.bf16 %v103
  %v391 = vunpack.c.l.bf16 %v104
  %v392 = vunpack.c.h.bf16 %v104
  %v393 = vunpack.c.l.bf16 %v105
  %v394 = vunpack.c.h.bf16 %v105
  %v395 = vunpack.c.l.bf16 %v106
  %v396 = vunpack.c.h.bf16 %v106
  %v397 = vunpack.c.l.bf16 %v107
  %v398 = vunpack.c.h.bf16 %v107
  %v399 = vunpack.c.l.bf16 %v108
  %v400 = vunpack.c.h.bf16 %v108
  %v401 = vunpack.c.l.bf16 %v109
  %v402 = vunpack.c.h.bf16 %v109
  %v403 = vunpack.c.l.bf16 %v110
  %v404 = vunpack.c.h.bf16 %v110
  %v405 = vunpack.c.l.bf16 %v111
  %v406 = vunpack.c.h.bf16 %v111
  %v407 = vunpack.c.l.bf16 %v112
  %v408 = vunpack.c.h.bf16 %v112
  %v409 = vunpack.c.l.bf16 %v113
  %v410 = vunpack.c.h.bf16 %v113
  %v411 = vunpack.c.l.bf16 %v114
  %v412 = vunpack.c.h.bf16 %v114
  %v413 = vunpack.c.l.bf16 %v115
  %v414 = vunpack.c.h.bf16 %v115
  %v415 = vunpack.c.l.bf16 %v116
  %v416 = vunpack.c.h.bf16 %v116
  %v417 = vunpack.c.l.bf16 %v117
  %v418 = vunpack.c.h.bf16 %v117
  %v419 = vunpack.c.l.bf16 %v118
  %v420 = vunpack.c.h.bf16 %v118
  %v421 = vunpack.c.l.bf16 %v119
  %v422 = vunpack.c.h.bf16 %v119
  %v423 = vunpack.c.l.bf16 %v120
  %v424 = vunpack.c.h.bf16 %v120
  %v425 = vunpack.c.l.bf16 %v121
  %v426 = vunpack.c.h.bf16 %v121
  %v427 = vunpack.c.l.bf16 %v122
  %v428 = vunpack.c.h.bf16 %v122
  %v429 = vunpack.c.l.bf16 %v123
  %v430 = vunpack.c.h.bf16 %v123
  %v431 = vunpack.c.l.bf16 %v124
  %v432 = vunpack.c.h.bf16 %v124
  %v433 = vunpack.c.l.bf16 %v125
  %v434 = vunpack.c.h.bf16 %v125
  %v435 = vunpack.c.l.bf16 %v126
  %v436 = vunpack.c.h.bf16 %v126
  %v437 = vunpack.c.l.bf16 %v127
  %v438 = vunpack.c.h.bf16 %v127
  %v439 = vunpack.c.l.bf16 %v128
  %v440 = vunpack.c.h.bf16 %v128
  %v441 = vunpack.c.l.bf16 %v129
  %v442 = vunpack.c.h.bf16 %v129
  %v443 = vunpack.c.l.bf16 %v130
  %v444 = vunpack.c.h.bf16 %v130
  %v445 = vunpack.c.l.bf16 %v131
  %v446 = vunpack.c.h.bf16 %v131
  %v447 = vunpack.c.l.bf16 %v132
  %v448 = vunpack.c.h.bf16 %v132
  %v449 = vunpack.c.l.bf16 %v133
  %v450 = vunpack.c.h.bf16 %v133
  %v451 = vunpack.c.l.bf16 %v134
  %v452 = vunpack.c.h.bf16 %v134
  %v453 = vunpack.c.l.bf16 %v135
  %v454 = vunpack.c.h.bf16 %v135
  %v455 = vunpack.c.l.bf16 %v136
  %v456 = vunpack.c.h.bf16 %v136
  %v457 = vunpack.c.l.bf16 %v137
  %v458 = vunpack.c.h.bf16 %v137
  %v459 = vunpack.c.l.bf16 %v138
  %v460 = vunpack.c.h.bf16 %v138
  %v461 = vunpack.c.l.bf16 %v139
  %v462 = vunpack.c.h.bf16 %v139
  %v463 = vunpack.c.l.bf16 %v140
  %v464 = vunpack.c.h.bf16 %v140
  %v465 = vunpack.c.l.bf16 %v141
  %v466 = vunpack.c.h.bf16 %v141
  %v467 = vunpack.c.l.bf16 %v142
  %v468 = vunpack.c.h.bf16 %v142
  %v469 = vunpack.c.l.bf16 %v143
  %v470 = vunpack.c.h.bf16 %v143
  %v471 = vunpack.c.l.bf16 %v144
  %v472 = vunpack.c.h.bf16 %v144
  %v473 = vunpack.c.l.bf16 %v145
  %v474 = vunpack.c.h.bf16 %v145
  %v475 = vunpack.c.l.bf16 %v146
  %v476 = vunpack.c.h.bf16 %v146
  %v477 = vunpack.c.l.bf16 %v147
  %v478 = vunpack.c.h.bf16 %v147
  %v479 = vunpack.c.l.bf16 %v148
  %v480 = vunpack.c.h.bf16 %v148
  %v481 = vunpack.c.l.bf16 %v149
  %v482 = vunpack.c.h.bf16 %v149
  %v483 = vunpack.c.l.bf16 %v150
  %v484 = vunpack.c.h.bf16 %v150
  %v485 = vunpack.c.l.bf16 %v151
  %v486 = vunpack.c.h.bf16 %v151
  %v487 = vunpack.c.l.bf16 %v152
  %v488 = vunpack.c.h.bf16 %v152
  %v489 = vunpack.c.l.bf16 %v153
  %v490 = vunpack.c.h.bf16 %v153
  %v491 = vunpack.c.l.bf16 %v154
  %v492 = vunpack.c.h.bf16 %v154
  %v493 = vunpack.c.l.bf16 %v155
  %v494 = vunpack.c.h.bf16 %v155
  %v495 = vunpack.c.l.bf16 %v156
  %v496 = vunpack.c.h.bf16 %v156
  %v497 = vunpack.c.l.bf16 %v157
  %v498 = vunpack.c.h.bf16 %v157
  %v499 = vunpack.c.l.bf16 %v158
  %v500 = vunpack.c.h.bf16 %v158
  %v501 = vunpack.c.l.bf16 %v159
  %v502 = vunpack.c.h.bf16 %v159
  %v503 = vunpack.c.l.bf16 %v160
  %v504 = vunpack.c.h.bf16 %v160
  %v505 = vunpack.c.l.bf16 %v161
  %v506 = vunpack.c.h.bf16 %v161
  %v507 = vunpack.c.l.bf16 %v162
  %v508 = vunpack.c.h.bf16 %v162
  %v509 = vunpack.c.l.bf16 %v163
  %v510 = vunpack.c.h.bf16 %v163
  %v511 = vunpack.c.l.bf16 %v164
  %v512 = vunpack.c.h.bf16 %v164
  %v513 = vunpack.c.l.bf16 %v165
  %v514 = vunpack.c.h.bf16 %v165
  %v515 = vunpack.c.l.bf16 %v166
  %v516 = vunpack.c.h.bf16 %v166
  %v517 = vunpack.c.l.bf16 %v167
  %v518 = vunpack.c.h.bf16 %v167
  %v519 = vunpack.c.l.bf16 %v168
  %v520 = vunpack.c.h.bf16 %v168
  %v521 = vunpack.c.l.bf16 %v169
  %v522 = vunpack.c.h.bf16 %v169
  %v523 = vunpack.c.l.bf16 %v170
  %v524 = vunpack.c.h.bf16 %v170
  %v525 = vunpack.c.l.bf16 %v171
  %v526 = vunpack.c.h.bf16 %v171
  %v527 = vunpack.c.l.bf16 %v172
  %v528 = vunpack.c.h.bf16 %v172
  %v529 = vunpack.c.l.bf16 %v173
  %v530 = vunpack.c.h.bf16 %v173
  %v531 = vunpack.c.l.bf16 %v174
  %v532 = vunpack.c.h.bf16 %v174
  %v533 = vunpack.c.l.bf16 %v175
  %v534 = vunpack.c.h.bf16 %v175
  %v535 = vunpack.c.l.bf16 %v176
  %v536 = vunpack.c.h.bf16 %v176
  %v537 = vunpack.c.l.bf16 %v177
  %v538 = vunpack.c.h.bf16 %v177
  %v539 = vunpack.c.l.bf16 %v178
  %v540 = vunpack.c.h.bf16 %v178
  %v541 = vunpack.c.l.bf16 %v179
  %v542 = vunpack.c.h.bf16 %v179
  %v543 = vunpack.c.l.bf16 %v180
  %v544 = vunpack.c.h.bf16 %v180
  %v545 = vunpack.c.l.bf16 %v181
  %v546 = vunpack.c.h.bf16 %v181
  %v547 = vunpack.c.l.bf16 %v182
  %v548 = vunpack.c.h.bf16 %v182
  %v549 = vunpack.c.l.bf16 %v183
  %v550 = vunpack.c.h.bf16 %v183
  %v551 = vunpack.c.l.bf16 %v184
  %v552 = vunpack.c.h.bf16 %v184
  %v553 = vunpack.c.l.bf16 %v185
  %v554 = vunpack.c.h.bf16 %v185
  %v555 = vunpack.c.l.bf16 %v186
  %v556 = vunpack.c.h.bf16 %v186
  %v557 = vunpack.c.l.bf16 %v187
  %v558 = vunpack.c.h.bf16 %v187
  %v559 = vunpack.c.l.bf16 %v188
  %v560 = vunpack.c.h.bf16 %v188
  %v561 = vunpack.c.l.bf16 %v189
  %v562 = vunpack.c.h.bf16 %v189
  %v563 = vunpack.c.l.bf16 %v190
  %v564 = vunpack.c.h.bf16 %v190
  %v565 = vunpack.c.l.bf16 %v191
  %v566 = vunpack.c.h.bf16 %v191
  %v567 = vunpack.c.l.bf16 %v192
  %v568 = vunpack.c.h.bf16 %v192
  %v569 = vunpack.c.l.bf16 %v193
  %v570 = vunpack.c.h.bf16 %v193
  %v571 = vunpack.c.l.bf16 %v194
  %v572 = vunpack.c.h.bf16 %v194
  %v573 = vunpack.c.l.bf16 %v195
  %v574 = vunpack.c.h.bf16 %v195
  %v575 = vunpack.c.l.bf16 %v196
  %v576 = vunpack.c.h.bf16 %v196
  %v577 = vunpack.c.l.bf16 %v197
  %v578 = vunpack.c.h.bf16 %v197
  %v579 = vunpack.c.l.bf16 %v198
  %v580 = vunpack.c.h.bf16 %v198
  %v581 = vunpack.c.l.bf16 %v199
  %v582 = vunpack.c.h.bf16 %v199
  %v583 = vunpack.c.l.bf16 %v200
  %v584 = vunpack.c.h.bf16 %v200
  %v585 = vunpack.c.l.bf16 %v201
  %v586 = vunpack.c.h.bf16 %v201
  %v587 = vunpack.c.l.bf16 %v202
  %v588 = vunpack.c.h.bf16 %v202
  %v589 = vunpack.c.l.bf16 %v203
  %v590 = vunpack.c.h.bf16 %v203
  %v591 = vunpack.c.l.bf16 %v204
  %v592 = vunpack.c.h.bf16 %v204
  %v593 = vunpack.c.l.bf16 %v205
  %v594 = vunpack.c.h.bf16 %v205
  %v595 = vunpack.c.l.bf16 %v206
  %v596 = vunpack.c.h.bf16 %v206
  %v597 = vunpack.c.l.bf16 %v207
  %v598 = vunpack.c.h.bf16 %v207
  %v599 = vunpack.c.l.bf16 %v208
  %v600 = vunpack.c.h.bf16 %v208
  %v601 = vunpack.c.l.bf16 %v209
  %v602 = vunpack.c.h.bf16 %v209
  %v603 = vunpack.c.l.bf16 %v210
  %v604 = vunpack.c.h.bf16 %v210
  %v605 = vunpack.c.l.bf16 %v211
  %v606 = vunpack.c.h.bf16 %v211
  %v607 = vunpack.c.l.bf16 %v212
  %v608 = vunpack.c.h.bf16 %v212
  %v609 = vunpack.c.l.bf16 %v213
  %v610 = vunpack.c.h.bf16 %v213
  %v611 = vunpack.c.l.bf16 %v214
  %v612 = vunpack.c.h.bf16 %v214
  %v613 = vunpack.c.l.bf16 %v215
  %v614 = vunpack.c.h.bf16 %v215
  %v615 = vunpack.c.l.bf16 %v216
  %v616 = vunpack.c.h.bf16 %v216
  %v617 = vunpack.c.l.bf16 %v217
  %v618 = vunpack.c.h.bf16 %v217
  %v619 = vunpack.c.l.bf16 %v218
  %v620 = vunpack.c.h.bf16 %v218
  %v621 = vunpack.c.l.bf16 %v219
  %v622 = vunpack.c.h.bf16 %v219
  %v623 = vunpack.c.l.bf16 %v220
  %v624 = vunpack.c.h.bf16 %v220
  %v625 = vunpack.c.l.bf16 %v221
  %v626 = vunpack.c.h.bf16 %v221
  %v627 = vunpack.c.l.bf16 %v222
  %v628 = vunpack.c.h.bf16 %v222
  %v629 = vunpack.c.l.bf16 %v223
  %v630 = vunpack.c.h.bf16 %v223
  %v631 = vunpack.c.l.bf16 %v224
  %v632 = vunpack.c.h.bf16 %v224
  %v633 = vunpack.c.l.bf16 %v225
  %v634 = vunpack.c.h.bf16 %v225
  %v635 = vunpack.c.l.bf16 %v226
  %v636 = vunpack.c.h.bf16 %v226
  %v637 = vunpack.c.l.bf16 %v227
  %v638 = vunpack.c.h.bf16 %v227
  %v639 = vunpack.c.l.bf16 %v228
  %v640 = vunpack.c.h.bf16 %v228
  %v641 = vunpack.c.l.bf16 %v229
  %v642 = vunpack.c.h.bf16 %v229
  %v643 = vunpack.c.l.bf16 %v230
  %v644 = vunpack.c.h.bf16 %v230
  %v645 = vunpack.c.l.bf16 %v231
  %v646 = vunpack.c.h.bf16 %v231
  %v647 = vunpack.c.l.bf16 %v232
  %v648 = vunpack.c.h.bf16 %v232
  %v649 = vunpack.c.l.bf16 %v233
  %v650 = vunpack.c.h.bf16 %v233
  %v651 = vunpack.c.l.bf16 %v234
  %v652 = vunpack.c.h.bf16 %v234
  %v653 = vunpack.c.l.bf16 %v235
  %v654 = vunpack.c.h.bf16 %v235
  %v655 = vunpack.c.l.bf16 %v236
  %v656 = vunpack.c.h.bf16 %v236
  %v657 = vunpack.c.l.bf16 %v237
  %v658 = vunpack.c.h.bf16 %v237
  %v659 = vunpack.c.l.bf16 %v238
  %v660 = vunpack.c.h.bf16 %v238
  %v661 = vunpack.c.l.bf16 %v239
  %v662 = vunpack.c.h.bf16 %v239
  %v663 = vunpack.c.l.bf16 %v240
  %v664 = vunpack.c.h.bf16 %v240
  %v665 = vunpack.c.l.bf16 %v241
  %v666 = vunpack.c.h.bf16 %v241
  %v667 = vunpack.c.l.bf16 %v242
  %v668 = vunpack.c.h.bf16 %v242
  %v669 = vunpack.c.l.bf16 %v243
  %v670 = vunpack.c.h.bf16 %v243
  %v671 = vunpack.c.l.bf16 %v244
  %v672 = vunpack.c.h.bf16 %v244
  %v673 = vunpack.c.l.bf16 %v245
  %v674 = vunpack.c.h.bf16 %v245
  %v675 = vunpack.c.l.bf16 %v246
  %v676 = vunpack.c.h.bf16 %v246
  %v677 = vunpack.c.l.bf16 %v247
  %v678 = vunpack.c.h.bf16 %v247
  %v679 = vunpack.c.l.bf16 %v248
  %v680 = vunpack.c.h.bf16 %v248
  %v681 = vunpack.c.l.bf16 %v249
  %v682 = vunpack.c.h.bf16 %v249
  %v683 = vunpack.c.l.bf16 %v250
  %v684 = vunpack.c.h.bf16 %v250
  %v685 = vunpack.c.l.bf16 %v251
  %v686 = vunpack.c.h.bf16 %v251
  %v687 = vunpack.c.l.bf16 %v252
  %v688 = vunpack.c.h.bf16 %v252
  %v689 = vunpack.c.l.bf16 %v253
  %v690 = vunpack.c.h.bf16 %v253
  %v691 = vunpack.c.l.bf16 %v254
  %v692 = vunpack.c.h.bf16 %v254
  %v693 = vunpack.c.l.bf16 %v255
  %v694 = vunpack.c.h.bf16 %v255
  %v695 = vunpack.c.l.bf16 %v256
  %v696 = vunpack.c.h.bf16 %v256
  %v697 = vunpack.c.l.bf16 %v257
  %v698 = vunpack.c.h.bf16 %v257
  %v699 = vunpack.c.l.bf16 %v258
  %v700 = vunpack.c.h.bf16 %v258
  %v701 = vunpack.c.l.bf16 %v259
  %v702 = vunpack.c.h.bf16 %v259
  %v703 = vunpack.c.l.bf16 %v260
  %v704 = vunpack.c.h.bf16 %v260
  %v705 = vunpack.c.l.bf16 %v261
  %v706 = vunpack.c.h.bf16 %v261
  %v707 = vunpack.c.l.bf16 %v262
  %v708 = vunpack.c.h.bf16 %v262
  %v709 = vunpack.c.l.bf16 %v263
  %v710 = vunpack.c.h.bf16 %v263
  %v711 = vunpack.c.l.bf16 %v264
  %v712 = vunpack.c.h.bf16 %v264
  %v713 = vunpack.c.l.bf16 %v265
  %v714 = vunpack.c.h.bf16 %v265
  %v715 = vunpack.c.l.bf16 %v266
  %v716 = vunpack.c.h.bf16 %v266
  %v717 = vunpack.c.l.bf16 %v267
  %v718 = vunpack.c.h.bf16 %v267
  %v719 = vunpack.c.l.bf16 %v268
  %v720 = vunpack.c.h.bf16 %v268
  %v721 = vunpack.c.l.bf16 %v269
  %v722 = vunpack.c.h.bf16 %v269
  %v723 = vunpack.c.l.bf16 %v270
  %v724 = vunpack.c.h.bf16 %v270
  %v725 = vunpack.c.l.bf16 %v271
  %v726 = vunpack.c.h.bf16 %v271
  %v727 = vunpack.c.l.bf16 %v272
  %v728 = vunpack.c.h.bf16 %v272
  %v729 = vunpack.c.l.bf16 %v273
  %v730 = vunpack.c.h.bf16 %v273
  %v731 = vunpack.c.l.bf16 %v274
  %v732 = vunpack.c.h.bf16 %v274
  %v733 = vunpack.c.l.bf16 %v275
  %v734 = vunpack.c.h.bf16 %v275
  %v735 = vunpack.c.l.bf16 %v276
  %v736 = vunpack.c.h.bf16 %v276
  %v737 = vunpack.c.l.bf16 %v277
  %v738 = vunpack.c.h.bf16 %v277
  %v739 = vunpack.c.l.bf16 %v278
  %v740 = vunpack.c.h.bf16 %v278
  %v741 = vunpack.c.l.bf16 %v279
  %v742 = vunpack.c.h.bf16 %v279
  %v743 = vunpack.c.l.bf16 %v280
  %v744 = vunpack.c.h.bf16 %v280
  %v745 = vunpack.c.l.bf16 %v281
  %v746 = vunpack.c.h.bf16 %v281
  %v747 = vunpack.c.l.bf16 %v282
  %v748 = vunpack.c.h.bf16 %v282
  %v749 = vunpack.c.l.bf16 %v283
  %v750 = vunpack.c.h.bf16 %v283
  %v751 = vunpack.c.l.bf16 %v284
  %v752 = vunpack.c.h.bf16 %v284
  %v753 = vunpack.c.l.bf16 %v285
  %v754 = vunpack.c.h.bf16 %v285
  %v755 = vunpack.c.l.bf16 %v286
  %v756 = vunpack.c.h.bf16 %v286
  %v757 = vunpack.c.l.bf16 %v287
  %v758 = vunpack.c.h.bf16 %v287
  %v759 = vunpack.c.l.bf16 %v288
  %v760 = vunpack.c.h.bf16 %v288
  %v761 = vunpack.c.l.bf16 %v289
  %v762 = vunpack.c.h.bf16 %v289
  %v763 = vunpack.c.l.bf16 %v290
  %v764 = vunpack.c.h.bf16 %v290
  %v765 = vunpack.c.l.bf16 %v291
  %v766 = vunpack.c.h.bf16 %v291
  %v767 = vunpack.c.l.bf16 %v292
  %v768 = vunpack.c.h.bf16 %v292
  %v769 = vunpack.c.l.bf16 %v293
  %v770 = vunpack.c.h.bf16 %v293
  %v771 = vunpack.c.l.bf16 %v294
  %v772 = vunpack.c.h.bf16 %v294
  %v773 = vunpack.c.l.bf16 %v295
  %v774 = vunpack.c.h.bf16 %v295
  %v775 = vunpack.c.l.bf16 %v296
  %v776 = vunpack.c.h.bf16 %v296
  %v777 = vunpack.c.l.bf16 %v297
  %v778 = vunpack.c.h.bf16 %v297
  %v779 = vunpack.c.l.bf16 %v298
  %v780 = vunpack.c.h.bf16 %v298
  %v781 = vunpack.c.l.bf16 %v299
  %v782 = vunpack.c.h.bf16 %v299
  %v783 = vunpack.c.l.bf16 %v300
  %v784 = vunpack.c.h.bf16 %v300
  %v785 = vunpack.c.l.bf16 %v301
  %v786 = vunpack.c.h.bf16 %v301
  %v787 = vunpack.c.l.bf16 %v302
  %v788 = vunpack.c.h.bf16 %v302
  %v789 = vunpack.c.l.bf16 %v303
  %v790 = vunpack.c.h.bf16 %v303
  %v791 = vunpack.c.l.bf16 %v304
  %v792 = vunpack.c.h.bf16 %v304
  %v793 = vunpack.c.l.bf16 %v305
  %v794 = vunpack.c.h.bf16 %v305
  %v795 = vunpack.c.l.bf16 %v306
  %v796 = vunpack.c.h.bf16 %v306
  %v797 = vunpack.c.l.bf16 %v307
  %v798 = vunpack.c.h.bf16 %v307
  %v799 = vunpack.c.l.bf16 %v308
  %v800 = vunpack.c.h.bf16 %v308
  %v801 = vunpack.c.l.bf16 %v309
  %v802 = vunpack.c.h.bf16 %v309
  %v803 = vunpack.c.l.bf16 %v310
  %v804 = vunpack.c.h.bf16 %v310
  %v805 = vunpack.c.l.bf16 %v311
  %v806 = vunpack.c.h.bf16 %v311
  %v807 = vunpack.c.l.bf16 %v312
  %v808 = vunpack.c.h.bf16 %v312
  %v809 = vunpack.c.l.bf16 %v313
  %v810 = vunpack.c.h.bf16 %v313
  %v811 = vunpack.c.l.bf16 %v314
  %v812 = vunpack.c.h.bf16 %v314
  %v813 = vunpack.c.l.bf16 %v315
  %v814 = vunpack.c.h.bf16 %v315
  %v815 = vunpack.c.l.bf16 %v316
  %v816 = vunpack.c.h.bf16 %v316
  %v817 = vunpack.c.l.bf16 %v317
  %v818 = vunpack.c.h.bf16 %v317
  %v819 = vunpack.c.l.bf16 %v318
  %v820 = vunpack.c.h.bf16 %v318
  %v821 = vunpack.c.l.bf16 %v319
  %v822 = vunpack.c.h.bf16 %v319
  %v823 = vunpack.c.l.bf16 %v320
  %v824 = vunpack.c.h.bf16 %v320
  %v825 = vunpack.c.l.bf16 %v321
  %v826 = vunpack.c.h.bf16 %v321
  %v827 = vunpack.c.l.bf16 %v322
  %v828 = vunpack.c.h.bf16 %v322
  %v829 = vunpack.c.l.bf16 %v323
  %v830 = vunpack.c.h.bf16 %v323
  %v831 = vunpack.c.l.bf16 %v324
  %v832 = vunpack.c.h.bf16 %v324
  %v833 = vunpack.c.l.bf16 %v325
  %v834 = vunpack.c.h.bf16 %v325
  %v835 = vunpack.c.l.bf16 %v326
  %v836 = vunpack.c.h.bf16 %v326
  %v837 = vunpack.c.l.bf16 %v327
  %v838 = vunpack.c.h.bf16 %v327
  %v839 = vunpack.c.l.bf16 %v328
  %v840 = vunpack.c.h.bf16 %v328
  %v841 = vld [vmem:[%s2] sm:$0xf]
  %v843 = vlaneseq
  %v844 = vshrl.u32 %v843, 7
  %v845 = vsub.s32 0, %v844
  %v846 = vrot.slane %v841, %v845
  %v847 = vlaneseq
  %v848 = vshrl.u32 %v847, 7
  %v849 = vsub.s32 1, %v848
  %v850 = vrot.slane %v841, %v849
  %v851 = vlaneseq
  %v852 = vshrl.u32 %v851, 7
  %v853 = vsub.s32 2, %v852
  %v854 = vrot.slane %v841, %v853
  %v855 = vlaneseq
  %v856 = vshrl.u32 %v855, 7
  %v857 = vsub.s32 3, %v856
  %v858 = vrot.slane %v841, %v857
  %863 = vmatprep.subr.mxu0 %v330
  %864 = vmatpush1.msra.mxu0 %v329
  %865 = vmatprep.subr.mxu0 %v334
  %866 = vmatpush1.msra.mxu0 %v333
  %867 = vmatprep.subr.mxu0 %v338
  %868 = vmatpush1.msra.mxu0 %v337
  %869 = vmatprep.subr.mxu0 %v342
  %870 = vmatpush1.msra.mxu0 %v341
  %871 = vmatprep.subr.mxu0 %v346
  %872 = vmatpush1.msra.mxu0 %v345
  %873 = vmatprep.subr.mxu0 %v350
  %874 = vmatpush1.msra.mxu0 %v349
  %875 = vmatprep.subr.mxu0 %v354
  %876 = vmatpush1.msra.mxu0 %v353
  %877 = vmatprep.subr.mxu0 %v358
  %878 = vmatpush1.msra.mxu0 %v357
  %879 = vmatprep.subr.mxu0 %v362
  %880 = vmatpush1.msra.mxu0 %v361
  %881 = vmatprep.subr.mxu0 %v366
  %882 = vmatpush1.msra.mxu0 %v365
  %883 = vmatprep.subr.mxu0 %v370
  %884 = vmatpush1.msra.mxu0 %v369
  %885 = vmatprep.subr.mxu0 %v374
  %886 = vmatpush1.msra.mxu0 %v373
  %887 = vmatprep.subr.mxu0 %v378
  %888 = vmatpush1.msra.mxu0 %v377
  %889 = vmatprep.subr.mxu0 %v382
  %890 = vmatpush1.msra.mxu0 %v381
  %891 = vmatprep.subr.mxu0 %v386
  %892 = vmatpush1.msra.mxu0 %v385
  %893 = vmatprep.subr.mxu0 %v390
  %894 = vmatpush1.msra.mxu0 %v389
  %895 = vmatprep.subr.mxu0 %v394
  %896 = vmatpush1.msra.mxu0 %v393
  %897 = vmatprep.subr.mxu0 %v398
  %898 = vmatpush1.msra.mxu0 %v397
  %899 = vmatprep.subr.mxu0 %v402
  %900 = vmatpush1.msra.mxu0 %v401
  %901 = vmatprep.subr.mxu0 %v406
  %902 = vmatpush1.msra.mxu0 %v405
  %903 = vmatprep.subr.mxu0 %v410
  %904 = vmatpush1.msra.mxu0 %v409
  %905 = vmatprep.subr.mxu0 %v414
  %906 = vmatpush1.msra.mxu0 %v413
  %907 = vmatprep.subr.mxu0 %v418
  %908 = vmatpush1.msra.mxu0 %v417
  %909 = vmatprep.subr.mxu0 %v422
  %910 = vmatpush1.msra.mxu0 %v421
  %911 = vmatprep.subr.mxu0 %v426
  %912 = vmatpush1.msra.mxu0 %v425
  %913 = vmatprep.subr.mxu0 %v430
  %914 = vmatpush1.msra.mxu0 %v429
  %915 = vmatprep.subr.mxu0 %v434
  %916 = vmatpush1.msra.mxu0 %v433
  %917 = vmatprep.subr.mxu0 %v438
  %918 = vmatpush1.msra.mxu0 %v437
  %919 = vmatprep.subr.mxu0 %v442
  %920 = vmatpush1.msra.mxu0 %v441
  %921 = vmatprep.subr.mxu0 %v446
  %922 = vmatpush1.msra.mxu0 %v445
  %923 = vmatprep.subr.mxu0 %v450
  %924 = vmatpush1.msra.mxu0 %v449
  %925 = vmatprep.subr.mxu0 %v454
  %926 = vmatpush1.msra.mxu0 %v453
  %927 = vmatprep.mubr.f32.mxu0 %v66
  %928 = vmatmul.mubr.f32.gmra.mrb[0].mxu0 %v65
  %v929 = vpop.f32.mrb[0].mxu0
  %v930 = vadd.f32 %v846, %v929
  %v931 = vpop.f32.mrb[0].mxu0
  %v932 = vadd.f32 %v850, %v931
  %933 = vdwg.mxu0
  %934 = vmatprep.subr.mxu0 %v458
  %935 = vmatpush1.msra.mxu0 %v457
  %936 = vmatprep.subr.mxu0 %v462
  %937 = vmatpush1.msra.mxu0 %v461
  %938 = vmatprep.subr.mxu0 %v466
  %939 = vmatpush1.msra.mxu0 %v465
  %940 = vmatprep.subr.mxu0 %v470
  %941 = vmatpush1.msra.mxu0 %v469
  %942 = vmatprep.subr.mxu0 %v474
  %943 = vmatpush1.msra.mxu0 %v473
  %944 = vmatprep.subr.mxu0 %v478
  %945 = vmatpush1.msra.mxu0 %v477
  %946 = vmatprep.subr.mxu0 %v482
  %947 = vmatpush1.msra.mxu0 %v481
  %948 = vmatprep.subr.mxu0 %v486
  %949 = vmatpush1.msra.mxu0 %v485
  %950 = vmatprep.subr.mxu0 %v490
  %951 = vmatpush1.msra.mxu0 %v489
  %952 = vmatprep.subr.mxu0 %v494
  %953 = vmatpush1.msra.mxu0 %v493
  %954 = vmatprep.subr.mxu0 %v498
  %955 = vmatpush1.msra.mxu0 %v497
  %956 = vmatprep.subr.mxu0 %v502
  %957 = vmatpush1.msra.mxu0 %v501
  %958 = vmatprep.subr.mxu0 %v506
  %959 = vmatpush1.msra.mxu0 %v505
  %960 = vmatprep.subr.mxu0 %v510
  %961 = vmatpush1.msra.mxu0 %v509
  %962 = vmatprep.subr.mxu0 %v514
  %963 = vmatpush1.msra.mxu0 %v513
  %964 = vmatprep.subr.mxu0 %v518
  %965 = vmatpush1.msra.mxu0 %v517
  %966 = vmatprep.subr.mxu0 %v522
  %967 = vmatpush1.msra.mxu0 %v521
  %968 = vmatprep.subr.mxu0 %v526
  %969 = vmatpush1.msra.mxu0 %v525
  %970 = vmatprep.subr.mxu0 %v530
  %971 = vmatpush1.msra.mxu0 %v529
  %972 = vmatprep.subr.mxu0 %v534
  %973 = vmatpush1.msra.mxu0 %v533
  %974 = vmatprep.subr.mxu0 %v538
  %975 = vmatpush1.msra.mxu0 %v537
  %976 = vmatprep.subr.mxu0 %v542
  %977 = vmatpush1.msra.mxu0 %v541
  %978 = vmatprep.subr.mxu0 %v546
  %979 = vmatpush1.msra.mxu0 %v545
  %980 = vmatprep.subr.mxu0 %v550
  %981 = vmatpush1.msra.mxu0 %v549
  %982 = vmatprep.subr.mxu0 %v554
  %983 = vmatpush1.msra.mxu0 %v553
  %984 = vmatprep.subr.mxu0 %v558
  %985 = vmatpush1.msra.mxu0 %v557
  %986 = vmatprep.subr.mxu0 %v562
  %987 = vmatpush1.msra.mxu0 %v561
  %988 = vmatprep.subr.mxu0 %v566
  %989 = vmatpush1.msra.mxu0 %v565
  %990 = vmatprep.subr.mxu0 %v570
  %991 = vmatpush1.msra.mxu0 %v569
  %992 = vmatprep.subr.mxu0 %v574
  %993 = vmatpush1.msra.mxu0 %v573
  %994 = vmatprep.subr.mxu0 %v578
  %995 = vmatpush1.msra.mxu0 %v577
  %996 = vmatprep.subr.mxu0 %v582
  %997 = vmatpush1.msra.mxu0 %v581
  %998 = vmatprep.mubr.f32.mxu0 %v68
  %999 = vmatmul.mubr.f32.gmra.mrb[0].mxu0 %v67
  %v1000 = vpop.f32.mrb[0].mxu0
  %v1001 = vadd.f32 %v930, %v1000
  %v1002 = vpop.f32.mrb[0].mxu0
  %v1003 = vadd.f32 %v932, %v1002
  %1004 = vdwg.mxu0
  %1005 = vmatprep.subr.mxu0 %v586
  %1006 = vmatpush1.msra.mxu0 %v585
  %1007 = vmatprep.subr.mxu0 %v590
  %1008 = vmatpush1.msra.mxu0 %v589
  %1009 = vmatprep.subr.mxu0 %v594
  %1010 = vmatpush1.msra.mxu0 %v593
  %1011 = vmatprep.subr.mxu0 %v598
  %1012 = vmatpush1.msra.mxu0 %v597
  %1013 = vmatprep.subr.mxu0 %v602
  %1014 = vmatpush1.msra.mxu0 %v601
  %1015 = vmatprep.subr.mxu0 %v606
  %1016 = vmatpush1.msra.mxu0 %v605
  %1017 = vmatprep.subr.mxu0 %v610
  %1018 = vmatpush1.msra.mxu0 %v609
  %1019 = vmatprep.subr.mxu0 %v614
  %1020 = vmatpush1.msra.mxu0 %v613
  %1021 = vmatprep.subr.mxu0 %v618
  %1022 = vmatpush1.msra.mxu0 %v617
  %1023 = vmatprep.subr.mxu0 %v622
  %1024 = vmatpush1.msra.mxu0 %v621
  %1025 = vmatprep.subr.mxu0 %v626
  %1026 = vmatpush1.msra.mxu0 %v625
  %1027 = vmatprep.subr.mxu0 %v630
  %1028 = vmatpush1.msra.mxu0 %v629
  %1029 = vmatprep.subr.mxu0 %v634
  %1030 = vmatpush1.msra.mxu0 %v633
  %1031 = vmatprep.subr.mxu0 %v638
  %1032 = vmatpush1.msra.mxu0 %v637
  %1033 = vmatprep.subr.mxu0 %v642
  %1034 = vmatpush1.msra.mxu0 %v641
  %1035 = vmatprep.subr.mxu0 %v646
  %1036 = vmatpush1.msra.mxu0 %v645
  %1037 = vmatprep.subr.mxu0 %v650
  %1038 = vmatpush1.msra.mxu0 %v649
  %1039 = vmatprep.subr.mxu0 %v654
  %1040 = vmatpush1.msra.mxu0 %v653
  %1041 = vmatprep.subr.mxu0 %v658
  %1042 = vmatpush1.msra.mxu0 %v657
  %1043 = vmatprep.subr.mxu0 %v662
  %1044 = vmatpush1.msra.mxu0 %v661
  %1045 = vmatprep.subr.mxu0 %v666
  %1046 = vmatpush1.msra.mxu0 %v665
  %1047 = vmatprep.subr.mxu0 %v670
  %1048 = vmatpush1.msra.mxu0 %v669
  %1049 = vmatprep.subr.mxu0 %v674
  %1050 = vmatpush1.msra.mxu0 %v673
  %1051 = vmatprep.subr.mxu0 %v678
  %1052 = vmatpush1.msra.mxu0 %v677
  %1053 = vmatprep.subr.mxu0 %v682
  %1054 = vmatpush1.msra.mxu0 %v681
  %1055 = vmatprep.subr.mxu0 %v686
  %1056 = vmatpush1.msra.mxu0 %v685
  %1057 = vmatprep.subr.mxu0 %v690
  %1058 = vmatpush1.msra.mxu0 %v689
  %1059 = vmatprep.subr.mxu0 %v694
  %1060 = vmatpush1.msra.mxu0 %v693
  %1061 = vmatprep.subr.mxu0 %v698
  %1062 = vmatpush1.msra.mxu0 %v697
  %1063 = vmatprep.subr.mxu0 %v702
  %1064 = vmatpush1.msra.mxu0 %v701
  %1065 = vmatprep.subr.mxu0 %v706
  %1066 = vmatpush1.msra.mxu0 %v705
  %1067 = vmatprep.subr.mxu0 %v710
  %1068 = vmatpush1.msra.mxu0 %v709
  %1069 = vmatprep.mubr.f32.mxu0 %v70
  %1070 = vmatmul.mubr.f32.gmra.mrb[0].mxu0 %v69
  %v1071 = vpop.f32.mrb[0].mxu0
  %v1072 = vadd.f32 %v1001, %v1071
  %v1073 = vpop.f32.mrb[0].mxu0
  %v1074 = vadd.f32 %v1003, %v1073
  %1075 = vdwg.mxu0
  %1076 = vmatprep.subr.mxu0 %v714
  %1077 = vmatpush1.msra.mxu0 %v713
  %1078 = vmatprep.subr.mxu0 %v718
  %1079 = vmatpush1.msra.mxu0 %v717
  %1080 = vmatprep.subr.mxu0 %v722
  %1081 = vmatpush1.msra.mxu0 %v721
  %1082 = vmatprep.subr.mxu0 %v726
  %1083 = vmatpush1.msra.mxu0 %v725
  %1084 = vmatprep.subr.mxu0 %v730
  %1085 = vmatpush1.msra.mxu0 %v729
  %1086 = vmatprep.subr.mxu0 %v734
  %1087 = vmatpush1.msra.mxu0 %v733
  %1088 = vmatprep.subr.mxu0 %v738
  %1089 = vmatpush1.msra.mxu0 %v737
  %1090 = vmatprep.subr.mxu0 %v742
  %1091 = vmatpush1.msra.mxu0 %v741
  %1092 = vmatprep.subr.mxu0 %v746
  %1093 = vmatpush1.msra.mxu0 %v745
  %1094 = vmatprep.subr.mxu0 %v750
  %1095 = vmatpush1.msra.mxu0 %v749
  %1096 = vmatprep.subr.mxu0 %v754
  %1097 = vmatpush1.msra.mxu0 %v753
  %1098 = vmatprep.subr.mxu0 %v758
  %1099 = vmatpush1.msra.mxu0 %v757
  %1100 = vmatprep.subr.mxu0 %v762
  %1101 = vmatpush1.msra.mxu0 %v761
  %1102 = vmatprep.subr.mxu0 %v766
  %1103 = vmatpush1.msra.mxu0 %v765
  %1104 = vmatprep.subr.mxu0 %v770
  %1105 = vmatpush1.msra.mxu0 %v769
  %1106 = vmatprep.subr.mxu0 %v774
  %1107 = vmatpush1.msra.mxu0 %v773
  %1108 = vmatprep.subr.mxu0 %v778
  %1109 = vmatpush1.msra.mxu0 %v777
  %1110 = vmatprep.subr.mxu0 %v782
  %1111 = vmatpush1.msra.mxu0 %v781
  %1112 = vmatprep.subr.mxu0 %v786
  %1113 = vmatpush1.msra.mxu0 %v785
  %1114 = vmatprep.subr.mxu0 %v790
  %1115 = vmatpush1.msra.mxu0 %v789
  %1116 = vmatprep.subr.mxu0 %v794
  %1117 = vmatpush1.msra.mxu0 %v793
  %1118 = vmatprep.subr.mxu0 %v798
  %1119 = vmatpush1.msra.mxu0 %v797
  %1120 = vmatprep.subr.mxu0 %v802
  %1121 = vmatpush1.msra.mxu0 %v801
  %1122 = vmatprep.subr.mxu0 %v806
  %1123 = vmatpush1.msra.mxu0 %v805
  %1124 = vmatprep.subr.mxu0 %v810
  %1125 = vmatpush1.msra.mxu0 %v809
  %1126 = vmatprep.subr.mxu0 %v814
  %1127 = vmatpush1.msra.mxu0 %v813
  %1128 = vmatprep.subr.mxu0 %v818
  %1129 = vmatpush1.msra.mxu0 %v817
  %1130 = vmatprep.subr.mxu0 %v822
  %1131 = vmatpush1.msra.mxu0 %v821
  %1132 = vmatprep.subr.mxu0 %v826
  %1133 = vmatpush1.msra.mxu0 %v825
  %1134 = vmatprep.subr.mxu0 %v830
  %1135 = vmatpush1.msra.mxu0 %v829
  %1136 = vmatprep.subr.mxu0 %v834
  %1137 = vmatpush1.msra.mxu0 %v833
  %1138 = vmatprep.subr.mxu0 %v838
  %1139 = vmatpush1.msra.mxu0 %v837
  %1140 = vmatprep.mubr.f32.mxu0 %v72
  %1141 = vmatmul.mubr.f32.gmra.mrb[0].mxu0 %v71
  %v1142 = vpop.f32.mrb[0].mxu0
  %v1143 = vadd.f32 %v1072, %v1142
  %v1144 = vpop.f32.mrb[0].mxu0
  %v1145 = vadd.f32 %v1074, %v1144
  %1146 = vdwg.mxu0
  %1147 = vmatprep.subr.mxu0 %v332
  %1148 = vmatpush1.msra.mxu0 %v331
  %1149 = vmatprep.subr.mxu0 %v336
  %1150 = vmatpush1.msra.mxu0 %v335
  %1151 = vmatprep.subr.mxu0 %v340
  %1152 = vmatpush1.msra.mxu0 %v339
  %1153 = vmatprep.subr.mxu0 %v344
  %1154 = vmatpush1.msra.mxu0 %v343
  %1155 = vmatprep.subr.mxu0 %v348
  %1156 = vmatpush1.msra.mxu0 %v347
  %1157 = vmatprep.subr.mxu0 %v352
  %1158 = vmatpush1.msra.mxu0 %v351
  %1159 = vmatprep.subr.mxu0 %v356
  %1160 = vmatpush1.msra.mxu0 %v355
  %1161 = vmatprep.subr.mxu0 %v360
  %1162 = vmatpush1.msra.mxu0 %v359
  %1163 = vmatprep.subr.mxu0 %v364
  %1164 = vmatpush1.msra.mxu0 %v363
  %1165 = vmatprep.subr.mxu0 %v368
  %1166 = vmatpush1.msra.mxu0 %v367
  %1167 = vmatprep.subr.mxu0 %v372
  %1168 = vmatpush1.msra.mxu0 %v371
  %1169 = vmatprep.subr.mxu0 %v376
  %1170 = vmatpush1.msra.mxu0 %v375
  %1171 = vmatprep.subr.mxu0 %v380
  %1172 = vmatpush1.msra.mxu0 %v379
  %1173 = vmatprep.subr.mxu0 %v384
  %1174 = vmatpush1.msra.mxu0 %v383
  %1175 = vmatprep.subr.mxu0 %v388
  %1176 = vmatpush1.msra.mxu0 %v387
  %1177 = vmatprep.subr.mxu0 %v392
  %1178 = vmatpush1.msra.mxu0 %v391
  %1179 = vmatprep.subr.mxu0 %v396
  %1180 = vmatpush1.msra.mxu0 %v395
  %1181 = vmatprep.subr.mxu0 %v400
  %1182 = vmatpush1.msra.mxu0 %v399
  %1183 = vmatprep.subr.mxu0 %v404
  %1184 = vmatpush1.msra.mxu0 %v403
  %1185 = vmatprep.subr.mxu0 %v408
  %1186 = vmatpush1.msra.mxu0 %v407
  %1187 = vmatprep.subr.mxu0 %v412
  %1188 = vmatpush1.msra.mxu0 %v411
  %1189 = vmatprep.subr.mxu0 %v416
  %1190 = vmatpush1.msra.mxu0 %v415
  %1191 = vmatprep.subr.mxu0 %v420
  %1192 = vmatpush1.msra.mxu0 %v419
  %1193 = vmatprep.subr.mxu0 %v424
  %1194 = vmatpush1.msra.mxu0 %v423
  %1195 = vmatprep.subr.mxu0 %v428
  %1196 = vmatpush1.msra.mxu0 %v427
  %1197 = vmatprep.subr.mxu0 %v432
  %1198 = vmatpush1.msra.mxu0 %v431
  %1199 = vmatprep.subr.mxu0 %v436
  %1200 = vmatpush1.msra.mxu0 %v435
  %1201 = vmatprep.subr.mxu0 %v440
  %1202 = vmatpush1.msra.mxu0 %v439
  %1203 = vmatprep.subr.mxu0 %v444
  %1204 = vmatpush1.msra.mxu0 %v443
  %1205 = vmatprep.subr.mxu0 %v448
  %1206 = vmatpush1.msra.mxu0 %v447
  %1207 = vmatprep.subr.mxu0 %v452
  %1208 = vmatpush1.msra.mxu0 %v451
  %1209 = vmatprep.subr.mxu0 %v456
  %1210 = vmatpush1.msra.mxu0 %v455
  %1211 = vmatprep.mubr.f32.mxu0 %v66
  %1212 = vmatmul.mubr.f32.gmra.mrb[0].mxu0 %v65
  %v1213 = vpop.f32.mrb[0].mxu0
  %v1214 = vadd.f32 %v854, %v1213
  %v1215 = vpop.f32.mrb[0].mxu0
  %v1216 = vadd.f32 %v858, %v1215
  %1217 = vdwg.mxu0
  %1218 = vmatprep.subr.mxu0 %v460
  %1219 = vmatpush1.msra.mxu0 %v459
  %1220 = vmatprep.subr.mxu0 %v464
  %1221 = vmatpush1.msra.mxu0 %v463
  %1222 = vmatprep.subr.mxu0 %v468
  %1223 = vmatpush1.msra.mxu0 %v467
  %1224 = vmatprep.subr.mxu0 %v472
  %1225 = vmatpush1.msra.mxu0 %v471
  %1226 = vmatprep.subr.mxu0 %v476
  %1227 = vmatpush1.msra.mxu0 %v475
  %1228 = vmatprep.subr.mxu0 %v480
  %1229 = vmatpush1.msra.mxu0 %v479
  %1230 = vmatprep.subr.mxu0 %v484
  %1231 = vmatpush1.msra.mxu0 %v483
  %1232 = vmatprep.subr.mxu0 %v488
  %1233 = vmatpush1.msra.mxu0 %v487
  %1234 = vmatprep.subr.mxu0 %v492
  %1235 = vmatpush1.msra.mxu0 %v491
  %1236 = vmatprep.subr.mxu0 %v496
  %1237 = vmatpush1.msra.mxu0 %v495
  %1238 = vmatprep.subr.mxu0 %v500
  %1239 = vmatpush1.msra.mxu0 %v499
  %1240 = vmatprep.subr.mxu0 %v504
  %1241 = vmatpush1.msra.mxu0 %v503
  %1242 = vmatprep.subr.mxu0 %v508
  %1243 = vmatpush1.msra.mxu0 %v507
  %1244 = vmatprep.subr.mxu0 %v512
  %1245 = vmatpush1.msra.mxu0 %v511
  %1246 = vmatprep.subr.mxu0 %v516
  %1247 = vmatpush1.msra.mxu0 %v515
  %1248 = vmatprep.subr.mxu0 %v520
  %1249 = vmatpush1.msra.mxu0 %v519
  %1250 = vmatprep.subr.mxu0 %v524
  %1251 = vmatpush1.msra.mxu0 %v523
  %1252 = vmatprep.subr.mxu0 %v528
  %1253 = vmatpush1.msra.mxu0 %v527
  %1254 = vmatprep.subr.mxu0 %v532
  %1255 = vmatpush1.msra.mxu0 %v531
  %1256 = vmatprep.subr.mxu0 %v536
  %1257 = vmatpush1.msra.mxu0 %v535
  %1258 = vmatprep.subr.mxu0 %v540
  %1259 = vmatpush1.msra.mxu0 %v539
  %1260 = vmatprep.subr.mxu0 %v544
  %1261 = vmatpush1.msra.mxu0 %v543
  %1262 = vmatprep.subr.mxu0 %v548
  %1263 = vmatpush1.msra.mxu0 %v547
  %1264 = vmatprep.subr.mxu0 %v552
  %1265 = vmatpush1.msra.mxu0 %v551
  %1266 = vmatprep.subr.mxu0 %v556
  %1267 = vmatpush1.msra.mxu0 %v555
  %1268 = vmatprep.subr.mxu0 %v560
  %1269 = vmatpush1.msra.mxu0 %v559
  %1270 = vmatprep.subr.mxu0 %v564
  %1271 = vmatpush1.msra.mxu0 %v563
  %1272 = vmatprep.subr.mxu0 %v568
  %1273 = vmatpush1.msra.mxu0 %v567
  %1274 = vmatprep.subr.mxu0 %v572
  %1275 = vmatpush1.msra.mxu0 %v571
  %1276 = vmatprep.subr.mxu0 %v576
  %1277 = vmatpush1.msra.mxu0 %v575
  %1278 = vmatprep.subr.mxu0 %v580
  %1279 = vmatpush1.msra.mxu0 %v579
  %1280 = vmatprep.subr.mxu0 %v584
  %1281 = vmatpush1.msra.mxu0 %v583
  %1282 = vmatprep.mubr.f32.mxu0 %v68
  %1283 = vmatmul.mubr.f32.gmra.mrb[0].mxu0 %v67
  %v1284 = vpop.f32.mrb[0].mxu0
  %v1285 = vadd.f32 %v1214, %v1284
  %v1286 = vpop.f32.mrb[0].mxu0
  %v1287 = vadd.f32 %v1216, %v1286
  %1288 = vdwg.mxu0
  %1289 = vmatprep.subr.mxu0 %v588
  %1290 = vmatpush1.msra.mxu0 %v587
  %1291 = vmatprep.subr.mxu0 %v592
  %1292 = vmatpush1.msra.mxu0 %v591
  %1293 = vmatprep.subr.mxu0 %v596
  %1294 = vmatpush1.msra.mxu0 %v595
  %1295 = vmatprep.subr.mxu0 %v600
  %1296 = vmatpush1.msra.mxu0 %v599
  %1297 = vmatprep.subr.mxu0 %v604
  %1298 = vmatpush1.msra.mxu0 %v603
  %1299 = vmatprep.subr.mxu0 %v608
  %1300 = vmatpush1.msra.mxu0 %v607
  %1301 = vmatprep.subr.mxu0 %v612
  %1302 = vmatpush1.msra.mxu0 %v611
  %1303 = vmatprep.subr.mxu0 %v616
  %1304 = vmatpush1.msra.mxu0 %v615
  %1305 = vmatprep.subr.mxu0 %v620
  %1306 = vmatpush1.msra.mxu0 %v619
  %1307 = vmatprep.subr.mxu0 %v624
  %1308 = vmatpush1.msra.mxu0 %v623
  %1309 = vmatprep.subr.mxu0 %v628
  %1310 = vmatpush1.msra.mxu0 %v627
  %1311 = vmatprep.subr.mxu0 %v632
  %1312 = vmatpush1.msra.mxu0 %v631
  %1313 = vmatprep.subr.mxu0 %v636
  %1314 = vmatpush1.msra.mxu0 %v635
  %1315 = vmatprep.subr.mxu0 %v640
  %1316 = vmatpush1.msra.mxu0 %v639
  %1317 = vmatprep.subr.mxu0 %v644
  %1318 = vmatpush1.msra.mxu0 %v643
  %1319 = vmatprep.subr.mxu0 %v648
  %1320 = vmatpush1.msra.mxu0 %v647
  %1321 = vmatprep.subr.mxu0 %v652
  %1322 = vmatpush1.msra.mxu0 %v651
  %1323 = vmatprep.subr.mxu0 %v656
  %1324 = vmatpush1.msra.mxu0 %v655
  %1325 = vmatprep.subr.mxu0 %v660
  %1326 = vmatpush1.msra.mxu0 %v659
  %1327 = vmatprep.subr.mxu0 %v664
  %1328 = vmatpush1.msra.mxu0 %v663
  %1329 = vmatprep.subr.mxu0 %v668
  %1330 = vmatpush1.msra.mxu0 %v667
  %1331 = vmatprep.subr.mxu0 %v672
  %1332 = vmatpush1.msra.mxu0 %v671
  %1333 = vmatprep.subr.mxu0 %v676
  %1334 = vmatpush1.msra.mxu0 %v675
  %1335 = vmatprep.subr.mxu0 %v680
  %1336 = vmatpush1.msra.mxu0 %v679
  %1337 = vmatprep.subr.mxu0 %v684
  %1338 = vmatpush1.msra.mxu0 %v683
  %1339 = vmatprep.subr.mxu0 %v688
  %1340 = vmatpush1.msra.mxu0 %v687
  %1341 = vmatprep.subr.mxu0 %v692
  %1342 = vmatpush1.msra.mxu0 %v691
  %1343 = vmatprep.subr.mxu0 %v696
  %1344 = vmatpush1.msra.mxu0 %v695
  %1345 = vmatprep.subr.mxu0 %v700
  %1346 = vmatpush1.msra.mxu0 %v699
  %1347 = vmatprep.subr.mxu0 %v704
  %1348 = vmatpush1.msra.mxu0 %v703
  %1349 = vmatprep.subr.mxu0 %v708
  %1350 = vmatpush1.msra.mxu0 %v707
  %1351 = vmatprep.subr.mxu0 %v712
  %1352 = vmatpush1.msra.mxu0 %v711
  %1353 = vmatprep.mubr.f32.mxu0 %v70
  %1354 = vmatmul.mubr.f32.gmra.mrb[0].mxu0 %v69
  %v1355 = vpop.f32.mrb[0].mxu0
  %v1356 = vadd.f32 %v1285, %v1355
  %v1357 = vpop.f32.mrb[0].mxu0
  %v1358 = vadd.f32 %v1287, %v1357
  %1359 = vdwg.mxu0
  %1360 = vmatprep.subr.mxu0 %v716
  %1361 = vmatpush1.msra.mxu0 %v715
  %1362 = vmatprep.subr.mxu0 %v720
  %1363 = vmatpush1.msra.mxu0 %v719
  %1364 = vmatprep.subr.mxu0 %v724
  %1365 = vmatpush1.msra.mxu0 %v723
  %1366 = vmatprep.subr.mxu0 %v728
  %1367 = vmatpush1.msra.mxu0 %v727
  %1368 = vmatprep.subr.mxu0 %v732
  %1369 = vmatpush1.msra.mxu0 %v731
  %1370 = vmatprep.subr.mxu0 %v736
  %1371 = vmatpush1.msra.mxu0 %v735
  %1372 = vmatprep.subr.mxu0 %v740
  %1373 = vmatpush1.msra.mxu0 %v739
  %1374 = vmatprep.subr.mxu0 %v744
  %1375 = vmatpush1.msra.mxu0 %v743
  %1376 = vmatprep.subr.mxu0 %v748
  %1377 = vmatpush1.msra.mxu0 %v747
  %1378 = vmatprep.subr.mxu0 %v752
  %1379 = vmatpush1.msra.mxu0 %v751
  %1380 = vmatprep.subr.mxu0 %v756
  %1381 = vmatpush1.msra.mxu0 %v755
  %1382 = vmatprep.subr.mxu0 %v760
  %1383 = vmatpush1.msra.mxu0 %v759
  %1384 = vmatprep.subr.mxu0 %v764
  %1385 = vmatpush1.msra.mxu0 %v763
  %1386 = vmatprep.subr.mxu0 %v768
  %1387 = vmatpush1.msra.mxu0 %v767
  %1388 = vmatprep.subr.mxu0 %v772
  %1389 = vmatpush1.msra.mxu0 %v771
  %1390 = vmatprep.subr.mxu0 %v776
  %1391 = vmatpush1.msra.mxu0 %v775
  %1392 = vmatprep.subr.mxu0 %v780
  %1393 = vmatpush1.msra.mxu0 %v779
  %1394 = vmatprep.subr.mxu0 %v784
  %1395 = vmatpush1.msra.mxu0 %v783
  %1396 = vmatprep.subr.mxu0 %v788
  %1397 = vmatpush1.msra.mxu0 %v787
  %1398 = vmatprep.subr.mxu0 %v792
  %1399 = vmatpush1.msra.mxu0 %v791
  %1400 = vmatprep.subr.mxu0 %v796
  %1401 = vmatpush1.msra.mxu0 %v795
  %1402 = vmatprep.subr.mxu0 %v800
  %1403 = vmatpush1.msra.mxu0 %v799
  %1404 = vmatprep.subr.mxu0 %v804
  %1405 = vmatpush1.msra.mxu0 %v803
  %1406 = vmatprep.subr.mxu0 %v808
  %1407 = vmatpush1.msra.mxu0 %v807
  %1408 = vmatprep.subr.mxu0 %v812
  %1409 = vmatpush1.msra.mxu0 %v811
  %1410 = vmatprep.subr.mxu0 %v816
  %1411 = vmatpush1.msra.mxu0 %v815
  %1412 = vmatprep.subr.mxu0 %v820
  %1413 = vmatpush1.msra.mxu0 %v819
  %1414 = vmatprep.subr.mxu0 %v824
  %1415 = vmatpush1.msra.mxu0 %v823
  %1416 = vmatprep.subr.mxu0 %v828
  %1417 = vmatpush1.msra.mxu0 %v827
  %1418 = vmatprep.subr.mxu0 %v832
  %1419 = vmatpush1.msra.mxu0 %v831
  %1420 = vmatprep.subr.mxu0 %v836
  %1421 = vmatpush1.msra.mxu0 %v835
  %1422 = vmatprep.subr.mxu0 %v840
  %1423 = vmatpush1.msra.mxu0 %v839
  %1424 = vmatprep.mubr.f32.mxu0 %v72
  %1425 = vmatmul.mubr.f32.gmra.mrb[0].mxu0 %v71
  %v1426 = vpop.f32.mrb[0].mxu0
  %v1427 = vadd.f32 %v1356, %v1426
  %v1428 = vpop.f32.mrb[0].mxu0
  %v1429 = vadd.f32 %v1358, %v1428
  %1430 = vdwg.mxu0
  %v1431 = vrot.slane %v1143, 4
  %v1432 = vadd.f32 %v1143, %v1431
  %v1433 = vrot.slane %v1432, 2
  %v1434 = vadd.f32 %v1432, %v1433
  %v1435 = vrot.slane %v1434, 1
  %v1436 = vadd.f32 %v1434, %v1435
  %v1437 = vrot.slane %v1145, 4
  %v1438 = vadd.f32 %v1145, %v1437
  %v1439 = vrot.slane %v1438, 2
  %v1440 = vadd.f32 %v1438, %v1439
  %v1441 = vrot.slane %v1440, 1
  %v1442 = vadd.f32 %v1440, %v1441
  %v1443 = vrot.slane %v1427, 4
  %v1444 = vadd.f32 %v1427, %v1443
  %v1445 = vrot.slane %v1444, 2
  %v1446 = vadd.f32 %v1444, %v1445
  %v1447 = vrot.slane %v1446, 1
  %v1448 = vadd.f32 %v1446, %v1447
  %v1449 = vrot.slane %v1429, 4
  %v1450 = vadd.f32 %v1429, %v1449
  %v1451 = vrot.slane %v1450, 2
  %v1452 = vadd.f32 %v1450, %v1451
  %v1453 = vrot.slane %v1452, 1
  %v1454 = vadd.f32 %v1452, %v1453
  %v1455 = vmul.f32 %v1143, %v1143
  %v1456 = vmul.f32 %v1145, %v1145
  %v1457 = vmul.f32 %v1427, %v1427
  %v1458 = vmul.f32 %v1429, %v1429
  %v1459 = vrot.slane %v1455, 4
  %v1460 = vadd.f32 %v1455, %v1459
  %v1461 = vrot.slane %v1460, 2
  %v1462 = vadd.f32 %v1460, %v1461
  %v1463 = vrot.slane %v1462, 1
  %v1464 = vadd.f32 %v1462, %v1463
  %v1465 = vrot.slane %v1456, 4
  %v1466 = vadd.f32 %v1456, %v1465
  %v1467 = vrot.slane %v1466, 2
  %v1468 = vadd.f32 %v1466, %v1467
  %v1469 = vrot.slane %v1468, 1
  %v1470 = vadd.f32 %v1468, %v1469
  %v1471 = vrot.slane %v1457, 4
  %v1472 = vadd.f32 %v1457, %v1471
  %v1473 = vrot.slane %v1472, 2
  %v1474 = vadd.f32 %v1472, %v1473
  %v1475 = vrot.slane %v1474, 1
  %v1476 = vadd.f32 %v1474, %v1475
  %v1477 = vrot.slane %v1458, 4
  %v1478 = vadd.f32 %v1458, %v1477
  %v1479 = vrot.slane %v1478, 2
  %v1480 = vadd.f32 %v1478, %v1479
  %v1481 = vrot.slane %v1480, 1
  %v1482 = vadd.f32 %v1480, %v1481
  %v1483 = vmul.f32 %v1436, 0.125
  %v1484 = vmul.f32 %v1442, 0.125
  %v1485 = vmul.f32 %v1448, 0.125
  %v1486 = vmul.f32 %v1454, 0.125
  %v1487 = vmul.f32 %v1464, 0.125
  %v1488 = vmul.f32 %v1470, 0.125
  %v1489 = vmul.f32 %v1476, 0.125
  %v1490 = vmul.f32 %v1482, 0.125
  %v1491 = vmul.f32 %v1483, %v1483
  %v1492 = vmul.f32 %v1484, %v1484
  %v1493 = vmul.f32 %v1485, %v1485
  %v1494 = vmul.f32 %v1486, %v1486
  %v1495 = vsub.f32 %v1487, %v1491
  %v1496 = vsub.f32 %v1488, %v1492
  %v1497 = vsub.f32 %v1489, %v1493
  %v1498 = vsub.f32 %v1490, %v1494
  %v1499 = vsub.f32 %v1143, %v1483
  %v1500 = vsub.f32 %v1145, %v1484
  %v1501 = vsub.f32 %v1427, %v1485
  %v1502 = vsub.f32 %v1429, %v1486
  %v1503 = vadd.f32 %v1495, 1e-05
  %v1504 = vadd.f32 %v1496, 1e-05
  %v1505 = vadd.f32 %v1497, 1e-05
  %v1506 = vadd.f32 %v1498, 1e-05
  %v1507 = vrsqrt.pop %v1503
  %v1508 = vrsqrt.pop %v1504
  %v1509 = vrsqrt.pop %v1505
  %v1510 = vrsqrt.pop %v1506
  %v1511 = vmul.f32 %v1499, %v1507
  %v1512 = vmul.f32 %v1500, %v1508
  %v1513 = vmul.f32 %v1501, %v1509
  %v1514 = vmul.f32 %v1502, %v1510
  %v1515 = vld [vmem:[%s3] sm:$0xf]
  %v1517 = vlaneseq
  %v1518 = vshrl.u32 %v1517, 7
  %v1519 = vsub.s32 0, %v1518
  %v1520 = vrot.slane %v1515, %v1519
  %v1521 = vlaneseq
  %v1522 = vshrl.u32 %v1521, 7
  %v1523 = vsub.s32 1, %v1522
  %v1524 = vrot.slane %v1515, %v1523
  %v1525 = vlaneseq
  %v1526 = vshrl.u32 %v1525, 7
  %v1527 = vsub.s32 2, %v1526
  %v1528 = vrot.slane %v1515, %v1527
  %v1529 = vlaneseq
  %v1530 = vshrl.u32 %v1529, 7
  %v1531 = vsub.s32 3, %v1530
  %v1532 = vrot.slane %v1515, %v1531
  %v1537 = vmul.f32 %v1511, %v1520
  %v1538 = vmul.f32 %v1512, %v1524
  %v1539 = vmul.f32 %v1513, %v1528
  %v1540 = vmul.f32 %v1514, %v1532
  %v1541 = vld [vmem:[%s4] sm:$0xf]
  %v1543 = vlaneseq
  %v1544 = vshrl.u32 %v1543, 7
  %v1545 = vsub.s32 0, %v1544
  %v1546 = vrot.slane %v1541, %v1545
  %v1547 = vlaneseq
  %v1548 = vshrl.u32 %v1547, 7
  %v1549 = vsub.s32 1, %v1548
  %v1550 = vrot.slane %v1541, %v1549
  %v1551 = vlaneseq
  %v1552 = vshrl.u32 %v1551, 7
  %v1553 = vsub.s32 2, %v1552
  %v1554 = vrot.slane %v1541, %v1553
  %v1555 = vlaneseq
  %v1556 = vshrl.u32 %v1555, 7
  %v1557 = vsub.s32 3, %v1556
  %v1558 = vrot.slane %v1541, %v1557
  %v1563 = vadd.f32 %v1537, %v1546
  %v1564 = vadd.f32 %v1538, %v1550
  %v1565 = vadd.f32 %v1539, %v1554
  %v1566 = vadd.f32 %v1540, %v1558
  %v1567 = vxor.u32 %v1563, 2147483648
  %v1568 = vxor.u32 %v1564, 2147483648
  %v1569 = vxor.u32 %v1565, 2147483648
  %v1570 = vxor.u32 %v1566, 2147483648
  %v1571 = vmul.f32 %v1567, 1.442695
  %v1572 = vpow.pop %v1571
  %v1573 = vmul.f32 %v1568, 1.442695
  %v1574 = vpow.pop %v1573
  %v1575 = vmul.f32 %v1569, 1.442695
  %v1576 = vpow.pop %v1575
  %v1577 = vmul.f32 %v1570, 1.442695
  %v1578 = vpow.pop %v1577
  %v1579 = vadd.f32 %v1572, 1.0
  %v1580 = vadd.f32 %v1574, 1.0
  %v1581 = vadd.f32 %v1576, 1.0
  %v1582 = vadd.f32 %v1578, 1.0
  %v1583 = vrcp.pop %v1579
  %v1584 = vmul.f32 1.0, %v1583
  %v1585 = vrcp.pop %v1580
  %v1586 = vmul.f32 1.0, %v1585
  %v1587 = vrcp.pop %v1581
  %v1588 = vmul.f32 1.0, %v1587
  %v1589 = vrcp.pop %v1582
  %v1590 = vmul.f32 1.0, %v1589
  %v1591 = vmul.f32 %v1563, %v1584
  %v1592 = vmul.f32 %v1564, %v1586
  %v1593 = vmul.f32 %v1565, %v1588
  %v1594 = vmul.f32 %v1566, %v1590
  %v1595 = vld [vmem:[%s5] sm:$0xff]
  %v1596 = vld [vmem:[%s5 + $0x8] sm:$0xff]
  %v1597 = vld [vmem:[%s5 + $0x10] sm:$0xff]
  %v1598 = vld [vmem:[%s5 + $0x18] sm:$0xff]
  %v1599 = vld [vmem:[%s5 + $0x20] sm:$0xff]
  %v1600 = vld [vmem:[%s5 + $0x28] sm:$0xff]
  %v1601 = vld [vmem:[%s5 + $0x30] sm:$0xff]
  %v1602 = vld [vmem:[%s5 + $0x38] sm:$0xff]
  %v1603 = vld [vmem:[%s5 + $0x40] sm:$0xff]
  %v1604 = vld [vmem:[%s5 + $0x48] sm:$0xff]
  %v1605 = vld [vmem:[%s5 + $0x50] sm:$0xff]
  %v1606 = vld [vmem:[%s5 + $0x58] sm:$0xff]
  %v1607 = vld [vmem:[%s5 + $0x60] sm:$0xff]
  %v1608 = vld [vmem:[%s5 + $0x68] sm:$0xff]
  %v1609 = vld [vmem:[%s5 + $0x70] sm:$0xff]
  %v1610 = vld [vmem:[%s5 + $0x78] sm:$0xff]
  %v1611 = vld [vmem:[%s5 + $0x80] sm:$0xff]
  %v1612 = vld [vmem:[%s5 + $0x88] sm:$0xff]
  %v1613 = vld [vmem:[%s5 + $0x90] sm:$0xff]
  %v1614 = vld [vmem:[%s5 + $0x98] sm:$0xff]
  %v1615 = vld [vmem:[%s5 + $0xa0] sm:$0xff]
  %v1616 = vld [vmem:[%s5 + $0xa8] sm:$0xff]
  %v1617 = vld [vmem:[%s5 + $0xb0] sm:$0xff]
  %v1618 = vld [vmem:[%s5 + $0xb8] sm:$0xff]
  %v1619 = vld [vmem:[%s5 + $0xc0] sm:$0xff]
  %v1620 = vld [vmem:[%s5 + $0xc8] sm:$0xff]
  %v1621 = vld [vmem:[%s5 + $0xd0] sm:$0xff]
  %v1622 = vld [vmem:[%s5 + $0xd8] sm:$0xff]
  %v1623 = vld [vmem:[%s5 + $0xe0] sm:$0xff]
  %v1624 = vld [vmem:[%s5 + $0xe8] sm:$0xff]
  %v1625 = vld [vmem:[%s5 + $0xf0] sm:$0xff]
  %v1626 = vld [vmem:[%s5 + $0xf8] sm:$0xff]
  %v1627 = vld [vmem:[%s5 + $0x100] sm:$0xff]
  %v1628 = vld [vmem:[%s5 + $0x108] sm:$0xff]
  %v1629 = vld [vmem:[%s5 + $0x110] sm:$0xff]
  %v1630 = vld [vmem:[%s5 + $0x118] sm:$0xff]
  %v1631 = vld [vmem:[%s5 + $0x120] sm:$0xff]
  %v1632 = vld [vmem:[%s5 + $0x128] sm:$0xff]
  %v1633 = vld [vmem:[%s5 + $0x130] sm:$0xff]
  %v1634 = vld [vmem:[%s5 + $0x138] sm:$0xff]
  %v1635 = vld [vmem:[%s5 + $0x140] sm:$0xff]
  %v1636 = vld [vmem:[%s5 + $0x148] sm:$0xff]
  %v1637 = vld [vmem:[%s5 + $0x150] sm:$0xff]
  %v1638 = vld [vmem:[%s5 + $0x158] sm:$0xff]
  %v1639 = vld [vmem:[%s5 + $0x160] sm:$0xff]
  %v1640 = vld [vmem:[%s5 + $0x168] sm:$0xff]
  %v1641 = vld [vmem:[%s5 + $0x170] sm:$0xff]
  %v1642 = vld [vmem:[%s5 + $0x178] sm:$0xff]
  %v1643 = vld [vmem:[%s5 + $0x180] sm:$0xff]
  %v1644 = vld [vmem:[%s5 + $0x188] sm:$0xff]
  %v1645 = vld [vmem:[%s5 + $0x190] sm:$0xff]
  %v1646 = vld [vmem:[%s5 + $0x198] sm:$0xff]
  %v1647 = vld [vmem:[%s5 + $0x1a0] sm:$0xff]
  %v1648 = vld [vmem:[%s5 + $0x1a8] sm:$0xff]
  %v1649 = vld [vmem:[%s5 + $0x1b0] sm:$0xff]
  %v1650 = vld [vmem:[%s5 + $0x1b8] sm:$0xff]
  %v1651 = vld [vmem:[%s5 + $0x1c0] sm:$0xff]
  %v1652 = vld [vmem:[%s5 + $0x1c8] sm:$0xff]
  %v1653 = vld [vmem:[%s5 + $0x1d0] sm:$0xff]
  %v1654 = vld [vmem:[%s5 + $0x1d8] sm:$0xff]
  %v1655 = vld [vmem:[%s5 + $0x1e0] sm:$0xff]
  %v1656 = vld [vmem:[%s5 + $0x1e8] sm:$0xff]
  %v1657 = vld [vmem:[%s5 + $0x1f0] sm:$0xff]
  %v1658 = vld [vmem:[%s5 + $0x1f8] sm:$0xff]
  %v1659 = vunpack.c.l.bf16 %v1595
  %v1660 = vunpack.c.h.bf16 %v1595
  %v1661 = vunpack.c.l.bf16 %v1596
  %v1662 = vunpack.c.h.bf16 %v1596
  %v1663 = vunpack.c.l.bf16 %v1597
  %v1664 = vunpack.c.h.bf16 %v1597
  %v1665 = vunpack.c.l.bf16 %v1598
  %v1666 = vunpack.c.h.bf16 %v1598
  %v1667 = vunpack.c.l.bf16 %v1599
  %v1668 = vunpack.c.h.bf16 %v1599
  %v1669 = vunpack.c.l.bf16 %v1600
  %v1670 = vunpack.c.h.bf16 %v1600
  %v1671 = vunpack.c.l.bf16 %v1601
  %v1672 = vunpack.c.h.bf16 %v1601
  %v1673 = vunpack.c.l.bf16 %v1602
  %v1674 = vunpack.c.h.bf16 %v1602
  %v1675 = vunpack.c.l.bf16 %v1603
  %v1676 = vunpack.c.h.bf16 %v1603
  %v1677 = vunpack.c.l.bf16 %v1604
  %v1678 = vunpack.c.h.bf16 %v1604
  %v1679 = vunpack.c.l.bf16 %v1605
  %v1680 = vunpack.c.h.bf16 %v1605
  %v1681 = vunpack.c.l.bf16 %v1606
  %v1682 = vunpack.c.h.bf16 %v1606
  %v1683 = vunpack.c.l.bf16 %v1607
  %v1684 = vunpack.c.h.bf16 %v1607
  %v1685 = vunpack.c.l.bf16 %v1608
  %v1686 = vunpack.c.h.bf16 %v1608
  %v1687 = vunpack.c.l.bf16 %v1609
  %v1688 = vunpack.c.h.bf16 %v1609
  %v1689 = vunpack.c.l.bf16 %v1610
  %v1690 = vunpack.c.h.bf16 %v1610
  %v1691 = vunpack.c.l.bf16 %v1611
  %v1692 = vunpack.c.h.bf16 %v1611
  %v1693 = vunpack.c.l.bf16 %v1612
  %v1694 = vunpack.c.h.bf16 %v1612
  %v1695 = vunpack.c.l.bf16 %v1613
  %v1696 = vunpack.c.h.bf16 %v1613
  %v1697 = vunpack.c.l.bf16 %v1614
  %v1698 = vunpack.c.h.bf16 %v1614
  %v1699 = vunpack.c.l.bf16 %v1615
  %v1700 = vunpack.c.h.bf16 %v1615
  %v1701 = vunpack.c.l.bf16 %v1616
  %v1702 = vunpack.c.h.bf16 %v1616
  %v1703 = vunpack.c.l.bf16 %v1617
  %v1704 = vunpack.c.h.bf16 %v1617
  %v1705 = vunpack.c.l.bf16 %v1618
  %v1706 = vunpack.c.h.bf16 %v1618
  %v1707 = vunpack.c.l.bf16 %v1619
  %v1708 = vunpack.c.h.bf16 %v1619
  %v1709 = vunpack.c.l.bf16 %v1620
  %v1710 = vunpack.c.h.bf16 %v1620
  %v1711 = vunpack.c.l.bf16 %v1621
  %v1712 = vunpack.c.h.bf16 %v1621
  %v1713 = vunpack.c.l.bf16 %v1622
  %v1714 = vunpack.c.h.bf16 %v1622
  %v1715 = vunpack.c.l.bf16 %v1623
  %v1716 = vunpack.c.h.bf16 %v1623
  %v1717 = vunpack.c.l.bf16 %v1624
  %v1718 = vunpack.c.h.bf16 %v1624
  %v1719 = vunpack.c.l.bf16 %v1625
  %v1720 = vunpack.c.h.bf16 %v1625
  %v1721 = vunpack.c.l.bf16 %v1626
  %v1722 = vunpack.c.h.bf16 %v1626
  %v1723 = vunpack.c.l.bf16 %v1627
  %v1724 = vunpack.c.h.bf16 %v1627
  %v1725 = vunpack.c.l.bf16 %v1628
  %v1726 = vunpack.c.h.bf16 %v1628
  %v1727 = vunpack.c.l.bf16 %v1629
  %v1728 = vunpack.c.h.bf16 %v1629
  %v1729 = vunpack.c.l.bf16 %v1630
  %v1730 = vunpack.c.h.bf16 %v1630
  %v1731 = vunpack.c.l.bf16 %v1631
  %v1732 = vunpack.c.h.bf16 %v1631
  %v1733 = vunpack.c.l.bf16 %v1632
  %v1734 = vunpack.c.h.bf16 %v1632
  %v1735 = vunpack.c.l.bf16 %v1633
  %v1736 = vunpack.c.h.bf16 %v1633
  %v1737 = vunpack.c.l.bf16 %v1634
  %v1738 = vunpack.c.h.bf16 %v1634
  %v1739 = vunpack.c.l.bf16 %v1635
  %v1740 = vunpack.c.h.bf16 %v1635
  %v1741 = vunpack.c.l.bf16 %v1636
  %v1742 = vunpack.c.h.bf16 %v1636
  %v1743 = vunpack.c.l.bf16 %v1637
  %v1744 = vunpack.c.h.bf16 %v1637
  %v1745 = vunpack.c.l.bf16 %v1638
  %v1746 = vunpack.c.h.bf16 %v1638
  %v1747 = vunpack.c.l.bf16 %v1639
  %v1748 = vunpack.c.h.bf16 %v1639
  %v1749 = vunpack.c.l.bf16 %v1640
  %v1750 = vunpack.c.h.bf16 %v1640
  %v1751 = vunpack.c.l.bf16 %v1641
  %v1752 = vunpack.c.h.bf16 %v1641
  %v1753 = vunpack.c.l.bf16 %v1642
  %v1754 = vunpack.c.h.bf16 %v1642
  %v1755 = vunpack.c.l.bf16 %v1643
  %v1756 = vunpack.c.h.bf16 %v1643
  %v1757 = vunpack.c.l.bf16 %v1644
  %v1758 = vunpack.c.h.bf16 %v1644
  %v1759 = vunpack.c.l.bf16 %v1645
  %v1760 = vunpack.c.h.bf16 %v1645
  %v1761 = vunpack.c.l.bf16 %v1646
  %v1762 = vunpack.c.h.bf16 %v1646
  %v1763 = vunpack.c.l.bf16 %v1647
  %v1764 = vunpack.c.h.bf16 %v1647
  %v1765 = vunpack.c.l.bf16 %v1648
  %v1766 = vunpack.c.h.bf16 %v1648
  %v1767 = vunpack.c.l.bf16 %v1649
  %v1768 = vunpack.c.h.bf16 %v1649
  %v1769 = vunpack.c.l.bf16 %v1650
  %v1770 = vunpack.c.h.bf16 %v1650
  %v1771 = vunpack.c.l.bf16 %v1651
  %v1772 = vunpack.c.h.bf16 %v1651
  %v1773 = vunpack.c.l.bf16 %v1652
  %v1774 = vunpack.c.h.bf16 %v1652
  %v1775 = vunpack.c.l.bf16 %v1653
  %v1776 = vunpack.c.h.bf16 %v1653
  %v1777 = vunpack.c.l.bf16 %v1654
  %v1778 = vunpack.c.h.bf16 %v1654
  %v1779 = vunpack.c.l.bf16 %v1655
  %v1780 = vunpack.c.h.bf16 %v1655
  %v1781 = vunpack.c.l.bf16 %v1656
  %v1782 = vunpack.c.h.bf16 %v1656
  %v1783 = vunpack.c.l.bf16 %v1657
  %v1784 = vunpack.c.h.bf16 %v1657
  %v1785 = vunpack.c.l.bf16 %v1658
  %v1786 = vunpack.c.h.bf16 %v1658
  %v1787 = vld [vmem:[%s6] sm:$0x3]
  %v1789 = vlaneseq
  %v1790 = vshrl.u32 %v1789, 7
  %v1791 = vsub.s32 0, %v1790
  %v1792 = vrot.slane %v1787, %v1791
  %v1793 = vlaneseq
  %v1794 = vshrl.u32 %v1793, 7
  %v1795 = vsub.s32 1, %v1794
  %v1796 = vrot.slane %v1787, %v1795
  %1799 = vmatprep.subr.mxu0 %v1660
  %1800 = vmatpush1.msra.mxu0 %v1659
  %1801 = vmatprep.subr.mxu0 %v1662
  %1802 = vmatpush1.msra.mxu0 %v1661
  %1803 = vmatprep.subr.mxu0 %v1664
  %1804 = vmatpush1.msra.mxu0 %v1663
  %1805 = vmatprep.subr.mxu0 %v1666
  %1806 = vmatpush1.msra.mxu0 %v1665
  %1807 = vmatprep.subr.mxu0 %v1668
  %1808 = vmatpush1.msra.mxu0 %v1667
  %1809 = vmatprep.subr.mxu0 %v1670
  %1810 = vmatpush1.msra.mxu0 %v1669
  %1811 = vmatprep.subr.mxu0 %v1672
  %1812 = vmatpush1.msra.mxu0 %v1671
  %1813 = vmatprep.subr.mxu0 %v1674
  %1814 = vmatpush1.msra.mxu0 %v1673
  %1815 = vmatprep.subr.mxu0 %v1676
  %1816 = vmatpush1.msra.mxu0 %v1675
  %1817 = vmatprep.subr.mxu0 %v1678
  %1818 = vmatpush1.msra.mxu0 %v1677
  %1819 = vmatprep.subr.mxu0 %v1680
  %1820 = vmatpush1.msra.mxu0 %v1679
  %1821 = vmatprep.subr.mxu0 %v1682
  %1822 = vmatpush1.msra.mxu0 %v1681
  %1823 = vmatprep.subr.mxu0 %v1684
  %1824 = vmatpush1.msra.mxu0 %v1683
  %1825 = vmatprep.subr.mxu0 %v1686
  %1826 = vmatpush1.msra.mxu0 %v1685
  %1827 = vmatprep.subr.mxu0 %v1688
  %1828 = vmatpush1.msra.mxu0 %v1687
  %1829 = vmatprep.subr.mxu0 %v1690
  %1830 = vmatpush1.msra.mxu0 %v1689
  %1831 = vmatprep.subr.mxu0 %v1692
  %1832 = vmatpush1.msra.mxu0 %v1691
  %1833 = vmatprep.subr.mxu0 %v1694
  %1834 = vmatpush1.msra.mxu0 %v1693
  %1835 = vmatprep.subr.mxu0 %v1696
  %1836 = vmatpush1.msra.mxu0 %v1695
  %1837 = vmatprep.subr.mxu0 %v1698
  %1838 = vmatpush1.msra.mxu0 %v1697
  %1839 = vmatprep.subr.mxu0 %v1700
  %1840 = vmatpush1.msra.mxu0 %v1699
  %1841 = vmatprep.subr.mxu0 %v1702
  %1842 = vmatpush1.msra.mxu0 %v1701
  %1843 = vmatprep.subr.mxu0 %v1704
  %1844 = vmatpush1.msra.mxu0 %v1703
  %1845 = vmatprep.subr.mxu0 %v1706
  %1846 = vmatpush1.msra.mxu0 %v1705
  %1847 = vmatprep.subr.mxu0 %v1708
  %1848 = vmatpush1.msra.mxu0 %v1707
  %1849 = vmatprep.subr.mxu0 %v1710
  %1850 = vmatpush1.msra.mxu0 %v1709
  %1851 = vmatprep.subr.mxu0 %v1712
  %1852 = vmatpush1.msra.mxu0 %v1711
  %1853 = vmatprep.subr.mxu0 %v1714
  %1854 = vmatpush1.msra.mxu0 %v1713
  %1855 = vmatprep.subr.mxu0 %v1716
  %1856 = vmatpush1.msra.mxu0 %v1715
  %1857 = vmatprep.subr.mxu0 %v1718
  %1858 = vmatpush1.msra.mxu0 %v1717
  %1859 = vmatprep.subr.mxu0 %v1720
  %1860 = vmatpush1.msra.mxu0 %v1719
  %1861 = vmatprep.subr.mxu0 %v1722
  %1862 = vmatpush1.msra.mxu0 %v1721
  %1863 = vmatprep.mubr.f32.mxu0 %v1592
  %1864 = vmatmul.mubr.f32.gmra.mrb[0].mxu0 %v1591
  %v1865 = vpop.f32.mrb[0].mxu0
  %v1866 = vadd.f32 %v1792, %v1865
  %v1867 = vpop.f32.mrb[0].mxu0
  %v1868 = vadd.f32 %v1796, %v1867
  %1869 = vdwg.mxu0
  %1870 = vmatprep.subr.mxu0 %v1724
  %1871 = vmatpush1.msra.mxu0 %v1723
  %1872 = vmatprep.subr.mxu0 %v1726
  %1873 = vmatpush1.msra.mxu0 %v1725
  %1874 = vmatprep.subr.mxu0 %v1728
  %1875 = vmatpush1.msra.mxu0 %v1727
  %1876 = vmatprep.subr.mxu0 %v1730
  %1877 = vmatpush1.msra.mxu0 %v1729
  %1878 = vmatprep.subr.mxu0 %v1732
  %1879 = vmatpush1.msra.mxu0 %v1731
  %1880 = vmatprep.subr.mxu0 %v1734
  %1881 = vmatpush1.msra.mxu0 %v1733
  %1882 = vmatprep.subr.mxu0 %v1736
  %1883 = vmatpush1.msra.mxu0 %v1735
  %1884 = vmatprep.subr.mxu0 %v1738
  %1885 = vmatpush1.msra.mxu0 %v1737
  %1886 = vmatprep.subr.mxu0 %v1740
  %1887 = vmatpush1.msra.mxu0 %v1739
  %1888 = vmatprep.subr.mxu0 %v1742
  %1889 = vmatpush1.msra.mxu0 %v1741
  %1890 = vmatprep.subr.mxu0 %v1744
  %1891 = vmatpush1.msra.mxu0 %v1743
  %1892 = vmatprep.subr.mxu0 %v1746
  %1893 = vmatpush1.msra.mxu0 %v1745
  %1894 = vmatprep.subr.mxu0 %v1748
  %1895 = vmatpush1.msra.mxu0 %v1747
  %1896 = vmatprep.subr.mxu0 %v1750
  %1897 = vmatpush1.msra.mxu0 %v1749
  %1898 = vmatprep.subr.mxu0 %v1752
  %1899 = vmatpush1.msra.mxu0 %v1751
  %1900 = vmatprep.subr.mxu0 %v1754
  %1901 = vmatpush1.msra.mxu0 %v1753
  %1902 = vmatprep.subr.mxu0 %v1756
  %1903 = vmatpush1.msra.mxu0 %v1755
  %1904 = vmatprep.subr.mxu0 %v1758
  %1905 = vmatpush1.msra.mxu0 %v1757
  %1906 = vmatprep.subr.mxu0 %v1760
  %1907 = vmatpush1.msra.mxu0 %v1759
  %1908 = vmatprep.subr.mxu0 %v1762
  %1909 = vmatpush1.msra.mxu0 %v1761
  %1910 = vmatprep.subr.mxu0 %v1764
  %1911 = vmatpush1.msra.mxu0 %v1763
  %1912 = vmatprep.subr.mxu0 %v1766
  %1913 = vmatpush1.msra.mxu0 %v1765
  %1914 = vmatprep.subr.mxu0 %v1768
  %1915 = vmatpush1.msra.mxu0 %v1767
  %1916 = vmatprep.subr.mxu0 %v1770
  %1917 = vmatpush1.msra.mxu0 %v1769
  %1918 = vmatprep.subr.mxu0 %v1772
  %1919 = vmatpush1.msra.mxu0 %v1771
  %1920 = vmatprep.subr.mxu0 %v1774
  %1921 = vmatpush1.msra.mxu0 %v1773
  %1922 = vmatprep.subr.mxu0 %v1776
  %1923 = vmatpush1.msra.mxu0 %v1775
  %1924 = vmatprep.subr.mxu0 %v1778
  %1925 = vmatpush1.msra.mxu0 %v1777
  %1926 = vmatprep.subr.mxu0 %v1780
  %1927 = vmatpush1.msra.mxu0 %v1779
  %1928 = vmatprep.subr.mxu0 %v1782
  %1929 = vmatpush1.msra.mxu0 %v1781
  %1930 = vmatprep.subr.mxu0 %v1784
  %1931 = vmatpush1.msra.mxu0 %v1783
  %1932 = vmatprep.subr.mxu0 %v1786
  %1933 = vmatpush1.msra.mxu0 %v1785
  %1934 = vmatprep.mubr.f32.mxu0 %v1594
  %1935 = vmatmul.mubr.f32.gmra.mrb[0].mxu0 %v1593
  %v1936 = vpop.f32.mrb[0].mxu0
  %v1937 = vadd.f32 %v1866, %v1936
  %v1938 = vpop.f32.mrb[0].mxu0
  %v1939 = vadd.f32 %v1868, %v1938
  %1940 = vdwg.mxu0
  %v1941 = vrot.slane %v1937, 4
  %v1942 = vadd.f32 %v1937, %v1941
  %v1943 = vrot.slane %v1942, 2
  %v1944 = vadd.f32 %v1942, %v1943
  %v1945 = vrot.slane %v1944, 1
  %v1946 = vadd.f32 %v1944, %v1945
  %v1947 = vrot.slane %v1939, 4
  %v1948 = vadd.f32 %v1939, %v1947
  %v1949 = vrot.slane %v1948, 2
  %v1950 = vadd.f32 %v1948, %v1949
  %v1951 = vrot.slane %v1950, 1
  %v1952 = vadd.f32 %v1950, %v1951
  %v1953 = vmul.f32 %v1937, %v1937
  %v1954 = vmul.f32 %v1939, %v1939
  %v1955 = vrot.slane %v1953, 4
  %v1956 = vadd.f32 %v1953, %v1955
  %v1957 = vrot.slane %v1956, 2
  %v1958 = vadd.f32 %v1956, %v1957
  %v1959 = vrot.slane %v1958, 1
  %v1960 = vadd.f32 %v1958, %v1959
  %v1961 = vrot.slane %v1954, 4
  %v1962 = vadd.f32 %v1954, %v1961
  %v1963 = vrot.slane %v1962, 2
  %v1964 = vadd.f32 %v1962, %v1963
  %v1965 = vrot.slane %v1964, 1
  %v1966 = vadd.f32 %v1964, %v1965
  %v1967 = vmul.f32 %v1946, 0.125
  %v1968 = vmul.f32 %v1952, 0.125
  %v1969 = vmul.f32 %v1960, 0.125
  %v1970 = vmul.f32 %v1966, 0.125
  %v1971 = vmul.f32 %v1967, %v1967
  %v1972 = vmul.f32 %v1968, %v1968
  %v1973 = vsub.f32 %v1969, %v1971
  %v1974 = vsub.f32 %v1970, %v1972
  %v1975 = vsub.f32 %v1937, %v1967
  %v1976 = vsub.f32 %v1939, %v1968
  %v1977 = vadd.f32 %v1973, 1e-05
  %v1978 = vadd.f32 %v1974, 1e-05
  %v1979 = vrsqrt.pop %v1977
  %v1980 = vrsqrt.pop %v1978
  %v1981 = vmul.f32 %v1975, %v1979
  %v1982 = vmul.f32 %v1976, %v1980
  %v1983 = vld [vmem:[%s7] sm:$0x3]
  %v1985 = vlaneseq
  %v1986 = vshrl.u32 %v1985, 7
  %v1987 = vsub.s32 0, %v1986
  %v1988 = vrot.slane %v1983, %v1987
  %v1989 = vlaneseq
  %v1990 = vshrl.u32 %v1989, 7
  %v1991 = vsub.s32 1, %v1990
  %v1992 = vrot.slane %v1983, %v1991
  %v1995 = vmul.f32 %v1981, %v1988
  %v1996 = vmul.f32 %v1982, %v1992
  %v1997 = vld [vmem:[%s8] sm:$0x3]
  %v1999 = vlaneseq
  %v2000 = vshrl.u32 %v1999, 7
  %v2001 = vsub.s32 0, %v2000
  %v2002 = vrot.slane %v1997, %v2001
  %v2003 = vlaneseq
  %v2004 = vshrl.u32 %v2003, 7
  %v2005 = vsub.s32 1, %v2004
  %v2006 = vrot.slane %v1997, %v2005
  %v2009 = vadd.f32 %v1995, %v2002
  %v2010 = vadd.f32 %v1996, %v2006
  %v2011 = vxor.u32 %v2009, 2147483648
  %v2012 = vxor.u32 %v2010, 2147483648
  %v2013 = vmul.f32 %v2011, 1.442695
  %v2014 = vpow.pop %v2013
  %v2015 = vmul.f32 %v2012, 1.442695
  %v2016 = vpow.pop %v2015
  %v2017 = vadd.f32 %v2014, 1.0
  %v2018 = vadd.f32 %v2016, 1.0
  %v2019 = vrcp.pop %v2017
  %v2020 = vmul.f32 1.0, %v2019
  %v2021 = vrcp.pop %v2018
  %v2022 = vmul.f32 1.0, %v2021
  %v2023 = vmul.f32 %v2009, %v2020
  %v2024 = vmul.f32 %v2010, %v2022
  %v2025 = vld [vmem:[%s9] sm:$0xff]
  %v2026 = vld [vmem:[%s9 + $0x8] sm:$0xff]
  %v2027 = vld [vmem:[%s9 + $0x10] sm:$0xff]
  %v2028 = vld [vmem:[%s9 + $0x18] sm:$0xff]
  %v2029 = vld [vmem:[%s9 + $0x20] sm:$0xff]
  %v2030 = vld [vmem:[%s9 + $0x28] sm:$0xff]
  %v2031 = vld [vmem:[%s9 + $0x30] sm:$0xff]
  %v2032 = vld [vmem:[%s9 + $0x38] sm:$0xff]
  %v2033 = vld [vmem:[%s9 + $0x40] sm:$0xff]
  %v2034 = vld [vmem:[%s9 + $0x48] sm:$0xff]
  %v2035 = vld [vmem:[%s9 + $0x50] sm:$0xff]
  %v2036 = vld [vmem:[%s9 + $0x58] sm:$0xff]
  %v2037 = vld [vmem:[%s9 + $0x60] sm:$0xff]
  %v2038 = vld [vmem:[%s9 + $0x68] sm:$0xff]
  %v2039 = vld [vmem:[%s9 + $0x70] sm:$0xff]
  %v2040 = vld [vmem:[%s9 + $0x78] sm:$0xff]
  %v2041 = vld [vmem:[%s9 + $0x80] sm:$0xff]
  %v2042 = vld [vmem:[%s9 + $0x88] sm:$0xff]
  %v2043 = vld [vmem:[%s9 + $0x90] sm:$0xff]
  %v2044 = vld [vmem:[%s9 + $0x98] sm:$0xff]
  %v2045 = vld [vmem:[%s9 + $0xa0] sm:$0xff]
  %v2046 = vld [vmem:[%s9 + $0xa8] sm:$0xff]
  %v2047 = vld [vmem:[%s9 + $0xb0] sm:$0xff]
  %v2048 = vld [vmem:[%s9 + $0xb8] sm:$0xff]
  %v2049 = vld [vmem:[%s9 + $0xc0] sm:$0xff]
  %v2050 = vld [vmem:[%s9 + $0xc8] sm:$0xff]
  %v2051 = vld [vmem:[%s9 + $0xd0] sm:$0xff]
  %v2052 = vld [vmem:[%s9 + $0xd8] sm:$0xff]
  %v2053 = vld [vmem:[%s9 + $0xe0] sm:$0xff]
  %v2054 = vld [vmem:[%s9 + $0xe8] sm:$0xff]
  %v2055 = vld [vmem:[%s9 + $0xf0] sm:$0xff]
  %v2056 = vld [vmem:[%s9 + $0xf8] sm:$0xff]
  %v2057 = vunpack.c.l.bf16 %v2025
  %v2058 = vunpack.c.h.bf16 %v2025
  %v2059 = vunpack.c.l.bf16 %v2026
  %v2060 = vunpack.c.h.bf16 %v2026
  %v2061 = vunpack.c.l.bf16 %v2027
  %v2062 = vunpack.c.h.bf16 %v2027
  %v2063 = vunpack.c.l.bf16 %v2028
  %v2064 = vunpack.c.h.bf16 %v2028
  %v2065 = vunpack.c.l.bf16 %v2029
  %v2066 = vunpack.c.h.bf16 %v2029
  %v2067 = vunpack.c.l.bf16 %v2030
  %v2068 = vunpack.c.h.bf16 %v2030
  %v2069 = vunpack.c.l.bf16 %v2031
  %v2070 = vunpack.c.h.bf16 %v2031
  %v2071 = vunpack.c.l.bf16 %v2032
  %v2072 = vunpack.c.h.bf16 %v2032
  %v2073 = vunpack.c.l.bf16 %v2033
  %v2074 = vunpack.c.h.bf16 %v2033
  %v2075 = vunpack.c.l.bf16 %v2034
  %v2076 = vunpack.c.h.bf16 %v2034
  %v2077 = vunpack.c.l.bf16 %v2035
  %v2078 = vunpack.c.h.bf16 %v2035
  %v2079 = vunpack.c.l.bf16 %v2036
  %v2080 = vunpack.c.h.bf16 %v2036
  %v2081 = vunpack.c.l.bf16 %v2037
  %v2082 = vunpack.c.h.bf16 %v2037
  %v2083 = vunpack.c.l.bf16 %v2038
  %v2084 = vunpack.c.h.bf16 %v2038
  %v2085 = vunpack.c.l.bf16 %v2039
  %v2086 = vunpack.c.h.bf16 %v2039
  %v2087 = vunpack.c.l.bf16 %v2040
  %v2088 = vunpack.c.h.bf16 %v2040
  %v2089 = vunpack.c.l.bf16 %v2041
  %v2090 = vunpack.c.h.bf16 %v2041
  %v2091 = vunpack.c.l.bf16 %v2042
  %v2092 = vunpack.c.h.bf16 %v2042
  %v2093 = vunpack.c.l.bf16 %v2043
  %v2094 = vunpack.c.h.bf16 %v2043
  %v2095 = vunpack.c.l.bf16 %v2044
  %v2096 = vunpack.c.h.bf16 %v2044
  %v2097 = vunpack.c.l.bf16 %v2045
  %v2098 = vunpack.c.h.bf16 %v2045
  %v2099 = vunpack.c.l.bf16 %v2046
  %v2100 = vunpack.c.h.bf16 %v2046
  %v2101 = vunpack.c.l.bf16 %v2047
  %v2102 = vunpack.c.h.bf16 %v2047
  %v2103 = vunpack.c.l.bf16 %v2048
  %v2104 = vunpack.c.h.bf16 %v2048
  %v2105 = vunpack.c.l.bf16 %v2049
  %v2106 = vunpack.c.h.bf16 %v2049
  %v2107 = vunpack.c.l.bf16 %v2050
  %v2108 = vunpack.c.h.bf16 %v2050
  %v2109 = vunpack.c.l.bf16 %v2051
  %v2110 = vunpack.c.h.bf16 %v2051
  %v2111 = vunpack.c.l.bf16 %v2052
  %v2112 = vunpack.c.h.bf16 %v2052
  %v2113 = vunpack.c.l.bf16 %v2053
  %v2114 = vunpack.c.h.bf16 %v2053
  %v2115 = vunpack.c.l.bf16 %v2054
  %v2116 = vunpack.c.h.bf16 %v2054
  %v2117 = vunpack.c.l.bf16 %v2055
  %v2118 = vunpack.c.h.bf16 %v2055
  %v2119 = vunpack.c.l.bf16 %v2056
  %v2120 = vunpack.c.h.bf16 %v2056
  %v2121 = vld [vmem:[%s10] sm:$0x3]
  %v2123 = vlaneseq
  %v2124 = vshrl.u32 %v2123, 7
  %v2125 = vsub.s32 0, %v2124
  %v2126 = vrot.slane %v2121, %v2125
  %v2127 = vlaneseq
  %v2128 = vshrl.u32 %v2127, 7
  %v2129 = vsub.s32 1, %v2128
  %v2130 = vrot.slane %v2121, %v2129
  %2133 = vmatprep.subr.mxu0 %v2058
  %2134 = vmatpush1.msra.mxu0 %v2057
  %2135 = vmatprep.subr.mxu0 %v2060
  %2136 = vmatpush1.msra.mxu0 %v2059
  %2137 = vmatprep.subr.mxu0 %v2062
  %2138 = vmatpush1.msra.mxu0 %v2061
  %2139 = vmatprep.subr.mxu0 %v2064
  %2140 = vmatpush1.msra.mxu0 %v2063
  %2141 = vmatprep.subr.mxu0 %v2066
  %2142 = vmatpush1.msra.mxu0 %v2065
  %2143 = vmatprep.subr.mxu0 %v2068
  %2144 = vmatpush1.msra.mxu0 %v2067
  %2145 = vmatprep.subr.mxu0 %v2070
  %2146 = vmatpush1.msra.mxu0 %v2069
  %2147 = vmatprep.subr.mxu0 %v2072
  %2148 = vmatpush1.msra.mxu0 %v2071
  %2149 = vmatprep.subr.mxu0 %v2074
  %2150 = vmatpush1.msra.mxu0 %v2073
  %2151 = vmatprep.subr.mxu0 %v2076
  %2152 = vmatpush1.msra.mxu0 %v2075
  %2153 = vmatprep.subr.mxu0 %v2078
  %2154 = vmatpush1.msra.mxu0 %v2077
  %2155 = vmatprep.subr.mxu0 %v2080
  %2156 = vmatpush1.msra.mxu0 %v2079
  %2157 = vmatprep.subr.mxu0 %v2082
  %2158 = vmatpush1.msra.mxu0 %v2081
  %2159 = vmatprep.subr.mxu0 %v2084
  %2160 = vmatpush1.msra.mxu0 %v2083
  %2161 = vmatprep.subr.mxu0 %v2086
  %2162 = vmatpush1.msra.mxu0 %v2085
  %2163 = vmatprep.subr.mxu0 %v2088
  %2164 = vmatpush1.msra.mxu0 %v2087
  %2165 = vmatprep.subr.mxu0 %v2090
  %2166 = vmatpush1.msra.mxu0 %v2089
  %2167 = vmatprep.subr.mxu0 %v2092
  %2168 = vmatpush1.msra.mxu0 %v2091
  %2169 = vmatprep.subr.mxu0 %v2094
  %2170 = vmatpush1.msra.mxu0 %v2093
  %2171 = vmatprep.subr.mxu0 %v2096
  %2172 = vmatpush1.msra.mxu0 %v2095
  %2173 = vmatprep.subr.mxu0 %v2098
  %2174 = vmatpush1.msra.mxu0 %v2097
  %2175 = vmatprep.subr.mxu0 %v2100
  %2176 = vmatpush1.msra.mxu0 %v2099
  %2177 = vmatprep.subr.mxu0 %v2102
  %2178 = vmatpush1.msra.mxu0 %v2101
  %2179 = vmatprep.subr.mxu0 %v2104
  %2180 = vmatpush1.msra.mxu0 %v2103
  %2181 = vmatprep.subr.mxu0 %v2106
  %2182 = vmatpush1.msra.mxu0 %v2105
  %2183 = vmatprep.subr.mxu0 %v2108
  %2184 = vmatpush1.msra.mxu0 %v2107
  %2185 = vmatprep.subr.mxu0 %v2110
  %2186 = vmatpush1.msra.mxu0 %v2109
  %2187 = vmatprep.subr.mxu0 %v2112
  %2188 = vmatpush1.msra.mxu0 %v2111
  %2189 = vmatprep.subr.mxu0 %v2114
  %2190 = vmatpush1.msra.mxu0 %v2113
  %2191 = vmatprep.subr.mxu0 %v2116
  %2192 = vmatpush1.msra.mxu0 %v2115
  %2193 = vmatprep.subr.mxu0 %v2118
  %2194 = vmatpush1.msra.mxu0 %v2117
  %2195 = vmatprep.subr.mxu0 %v2120
  %2196 = vmatpush1.msra.mxu0 %v2119
  %2197 = vmatprep.mubr.f32.mxu0 %v2024
  %2198 = vmatmul.mubr.f32.gmra.mrb[0].mxu0 %v2023
  %v2199 = vpop.f32.mrb[0].mxu0
  %v2200 = vadd.f32 %v2126, %v2199
  %v2201 = vpop.f32.mrb[0].mxu0
  %v2202 = vadd.f32 %v2130, %v2201
  %2203 = vdwg.mxu0
  %v2204 = vrot.slane %v2200, 4
  %v2205 = vadd.f32 %v2200, %v2204
  %v2206 = vrot.slane %v2205, 2
  %v2207 = vadd.f32 %v2205, %v2206
  %v2208 = vrot.slane %v2207, 1
  %v2209 = vadd.f32 %v2207, %v2208
  %v2210 = vrot.slane %v2202, 4
  %v2211 = vadd.f32 %v2202, %v2210
  %v2212 = vrot.slane %v2211, 2
  %v2213 = vadd.f32 %v2211, %v2212
  %v2214 = vrot.slane %v2213, 1
  %v2215 = vadd.f32 %v2213, %v2214
  %v2216 = vmul.f32 %v2200, %v2200
  %v2217 = vmul.f32 %v2202, %v2202
  %v2218 = vrot.slane %v2216, 4
  %v2219 = vadd.f32 %v2216, %v2218
  %v2220 = vrot.slane %v2219, 2
  %v2221 = vadd.f32 %v2219, %v2220
  %v2222 = vrot.slane %v2221, 1
  %v2223 = vadd.f32 %v2221, %v2222
  %v2224 = vrot.slane %v2217, 4
  %v2225 = vadd.f32 %v2217, %v2224
  %v2226 = vrot.slane %v2225, 2
  %v2227 = vadd.f32 %v2225, %v2226
  %v2228 = vrot.slane %v2227, 1
  %v2229 = vadd.f32 %v2227, %v2228
  %v2230 = vmul.f32 %v2209, 0.125
  %v2231 = vmul.f32 %v2215, 0.125
  %v2232 = vmul.f32 %v2223, 0.125
  %v2233 = vmul.f32 %v2229, 0.125
  %v2234 = vmul.f32 %v2230, %v2230
  %v2235 = vmul.f32 %v2231, %v2231
  %v2236 = vsub.f32 %v2232, %v2234
  %v2237 = vsub.f32 %v2233, %v2235
  %v2238 = vsub.f32 %v2200, %v2230
  %v2239 = vsub.f32 %v2202, %v2231
  %v2240 = vadd.f32 %v2236, 1e-05
  %v2241 = vadd.f32 %v2237, 1e-05
  %v2242 = vrsqrt.pop %v2240
  %v2243 = vrsqrt.pop %v2241
  %v2244 = vmul.f32 %v2238, %v2242
  %v2245 = vmul.f32 %v2239, %v2243
  %v2246 = vld [vmem:[%s11] sm:$0x3]
  %v2248 = vlaneseq
  %v2249 = vshrl.u32 %v2248, 7
  %v2250 = vsub.s32 0, %v2249
  %v2251 = vrot.slane %v2246, %v2250
  %v2252 = vlaneseq
  %v2253 = vshrl.u32 %v2252, 7
  %v2254 = vsub.s32 1, %v2253
  %v2255 = vrot.slane %v2246, %v2254
  %v2258 = vmul.f32 %v2244, %v2251
  %v2259 = vmul.f32 %v2245, %v2255
  %v2260 = vld [vmem:[%s12] sm:$0x3]
  %v2262 = vlaneseq
  %v2263 = vshrl.u32 %v2262, 7
  %v2264 = vsub.s32 0, %v2263
  %v2265 = vrot.slane %v2260, %v2264
  %v2266 = vlaneseq
  %v2267 = vshrl.u32 %v2266, 7
  %v2268 = vsub.s32 1, %v2267
  %v2269 = vrot.slane %v2260, %v2268
  %v2272 = vadd.f32 %v2258, %v2265
  %v2273 = vadd.f32 %v2259, %v2269
  %v2274 = vxor.u32 %v2272, 2147483648
  %v2275 = vxor.u32 %v2273, 2147483648
  %v2276 = vmul.f32 %v2274, 1.442695
  %v2277 = vpow.pop %v2276
  %v2278 = vmul.f32 %v2275, 1.442695
  %v2279 = vpow.pop %v2278
  %v2280 = vadd.f32 %v2277, 1.0
  %v2281 = vadd.f32 %v2279, 1.0
  %v2282 = vrcp.pop %v2280
  %v2283 = vmul.f32 1.0, %v2282
  %v2284 = vrcp.pop %v2281
  %v2285 = vmul.f32 1.0, %v2284
  %v2286 = vmul.f32 %v2272, %v2283
  %v2287 = vmul.f32 %v2273, %v2285
  %v2288 = vld [vmem:[%s13] sm:$0xf]
  %v2289 = vld [vmem:[%s13 + $0x4] sm:$0xf]
  %v2290 = vld [vmem:[%s13 + $0x8] sm:$0xf]
  %v2291 = vld [vmem:[%s13 + $0xc] sm:$0xf]
  %v2292 = vld [vmem:[%s13 + $0x10] sm:$0xf]
  %v2293 = vld [vmem:[%s13 + $0x14] sm:$0xf]
  %v2294 = vld [vmem:[%s13 + $0x18] sm:$0xf]
  %v2295 = vld [vmem:[%s13 + $0x1c] sm:$0xf]
  %v2296 = vld [vmem:[%s13 + $0x20] sm:$0xf]
  %v2297 = vld [vmem:[%s13 + $0x24] sm:$0xf]
  %v2298 = vld [vmem:[%s13 + $0x28] sm:$0xf]
  %v2299 = vld [vmem:[%s13 + $0x2c] sm:$0xf]
  %v2300 = vld [vmem:[%s13 + $0x30] sm:$0xf]
  %v2301 = vld [vmem:[%s13 + $0x34] sm:$0xf]
  %v2302 = vld [vmem:[%s13 + $0x38] sm:$0xf]
  %v2303 = vld [vmem:[%s13 + $0x3c] sm:$0xf]
  %v2304 = vld [vmem:[%s13 + $0x40] sm:$0xf]
  %v2305 = vld [vmem:[%s13 + $0x44] sm:$0xf]
  %v2306 = vld [vmem:[%s13 + $0x48] sm:$0xf]
  %v2307 = vld [vmem:[%s13 + $0x4c] sm:$0xf]
  %v2308 = vld [vmem:[%s13 + $0x50] sm:$0xf]
  %v2309 = vld [vmem:[%s13 + $0x54] sm:$0xf]
  %v2310 = vld [vmem:[%s13 + $0x58] sm:$0xf]
  %v2311 = vld [vmem:[%s13 + $0x5c] sm:$0xf]
  %v2312 = vld [vmem:[%s13 + $0x60] sm:$0xf]
  %v2313 = vld [vmem:[%s13 + $0x64] sm:$0xf]
  %v2314 = vld [vmem:[%s13 + $0x68] sm:$0xf]
  %v2315 = vld [vmem:[%s13 + $0x6c] sm:$0xf]
  %v2316 = vld [vmem:[%s13 + $0x70] sm:$0xf]
  %v2317 = vld [vmem:[%s13 + $0x74] sm:$0xf]
  %v2318 = vld [vmem:[%s13 + $0x78] sm:$0xf]
  %v2319 = vld [vmem:[%s13 + $0x7c] sm:$0xf]
  %v2320 = vunpack.c.l.bf16 %v2288
  %v2321 = vunpack.c.l.bf16 %v2289
  %v2322 = vunpack.c.l.bf16 %v2290
  %v2323 = vunpack.c.l.bf16 %v2291
  %v2324 = vunpack.c.l.bf16 %v2292
  %v2325 = vunpack.c.l.bf16 %v2293
  %v2326 = vunpack.c.l.bf16 %v2294
  %v2327 = vunpack.c.l.bf16 %v2295
  %v2328 = vunpack.c.l.bf16 %v2296
  %v2329 = vunpack.c.l.bf16 %v2297
  %v2330 = vunpack.c.l.bf16 %v2298
  %v2331 = vunpack.c.l.bf16 %v2299
  %v2332 = vunpack.c.l.bf16 %v2300
  %v2333 = vunpack.c.l.bf16 %v2301
  %v2334 = vunpack.c.l.bf16 %v2302
  %v2335 = vunpack.c.l.bf16 %v2303
  %v2336 = vunpack.c.l.bf16 %v2304
  %v2337 = vunpack.c.l.bf16 %v2305
  %v2338 = vunpack.c.l.bf16 %v2306
  %v2339 = vunpack.c.l.bf16 %v2307
  %v2340 = vunpack.c.l.bf16 %v2308
  %v2341 = vunpack.c.l.bf16 %v2309
  %v2342 = vunpack.c.l.bf16 %v2310
  %v2343 = vunpack.c.l.bf16 %v2311
  %v2344 = vunpack.c.l.bf16 %v2312
  %v2345 = vunpack.c.l.bf16 %v2313
  %v2346 = vunpack.c.l.bf16 %v2314
  %v2347 = vunpack.c.l.bf16 %v2315
  %v2348 = vunpack.c.l.bf16 %v2316
  %v2349 = vunpack.c.l.bf16 %v2317
  %v2350 = vunpack.c.l.bf16 %v2318
  %v2351 = vunpack.c.l.bf16 %v2319
  %v2352 = vld [vmem:[%s14] sm:$0x1]
  %v2354 = vlaneseq
  %v2355 = vshrl.u32 %v2354, 7
  %v2356 = vsub.s32 0, %v2355
  %v2357 = vrot.slane %v2352, %v2356
  %2359 = vmatprep.subr.mxu0 0.0
  %2360 = vmatpush1.msra.mxu0 %v2320
  %2361 = vmatprep.subr.mxu0 0.0
  %2362 = vmatpush1.msra.mxu0 %v2321
  %2363 = vmatprep.subr.mxu0 0.0
  %2364 = vmatpush1.msra.mxu0 %v2322
  %2365 = vmatprep.subr.mxu0 0.0
  %2366 = vmatpush1.msra.mxu0 %v2323
  %2367 = vmatprep.subr.mxu0 0.0
  %2368 = vmatpush1.msra.mxu0 %v2324
  %2369 = vmatprep.subr.mxu0 0.0
  %2370 = vmatpush1.msra.mxu0 %v2325
  %2371 = vmatprep.subr.mxu0 0.0
  %2372 = vmatpush1.msra.mxu0 %v2326
  %2373 = vmatprep.subr.mxu0 0.0
  %2374 = vmatpush1.msra.mxu0 %v2327
  %2375 = vmatprep.subr.mxu0 0.0
  %2376 = vmatpush1.msra.mxu0 %v2328
  %2377 = vmatprep.subr.mxu0 0.0
  %2378 = vmatpush1.msra.mxu0 %v2329
  %2379 = vmatprep.subr.mxu0 0.0
  %2380 = vmatpush1.msra.mxu0 %v2330
  %2381 = vmatprep.subr.mxu0 0.0
  %2382 = vmatpush1.msra.mxu0 %v2331
  %2383 = vmatprep.subr.mxu0 0.0
  %2384 = vmatpush1.msra.mxu0 %v2332
  %2385 = vmatprep.subr.mxu0 0.0
  %2386 = vmatpush1.msra.mxu0 %v2333
  %2387 = vmatprep.subr.mxu0 0.0
  %2388 = vmatpush1.msra.mxu0 %v2334
  %2389 = vmatprep.subr.mxu0 0.0
  %2390 = vmatpush1.msra.mxu0 %v2335
  %2391 = vmatprep.subr.mxu0 0.0
  %2392 = vmatpush1.msra.mxu0 %v2336
  %2393 = vmatprep.subr.mxu0 0.0
  %2394 = vmatpush1.msra.mxu0 %v2337
  %2395 = vmatprep.subr.mxu0 0.0
  %2396 = vmatpush1.msra.mxu0 %v2338
  %2397 = vmatprep.subr.mxu0 0.0
  %2398 = vmatpush1.msra.mxu0 %v2339
  %2399 = vmatprep.subr.mxu0 0.0
  %2400 = vmatpush1.msra.mxu0 %v2340
  %2401 = vmatprep.subr.mxu0 0.0
  %2402 = vmatpush1.msra.mxu0 %v2341
  %2403 = vmatprep.subr.mxu0 0.0
  %2404 = vmatpush1.msra.mxu0 %v2342
  %2405 = vmatprep.subr.mxu0 0.0
  %2406 = vmatpush1.msra.mxu0 %v2343
  %2407 = vmatprep.subr.mxu0 0.0
  %2408 = vmatpush1.msra.mxu0 %v2344
  %2409 = vmatprep.subr.mxu0 0.0
  %2410 = vmatpush1.msra.mxu0 %v2345
  %2411 = vmatprep.subr.mxu0 0.0
  %2412 = vmatpush1.msra.mxu0 %v2346
  %2413 = vmatprep.subr.mxu0 0.0
  %2414 = vmatpush1.msra.mxu0 %v2347
  %2415 = vmatprep.subr.mxu0 0.0
  %2416 = vmatpush1.msra.mxu0 %v2348
  %2417 = vmatprep.subr.mxu0 0.0
  %2418 = vmatpush1.msra.mxu0 %v2349
  %2419 = vmatprep.subr.mxu0 0.0
  %2420 = vmatpush1.msra.mxu0 %v2350
  %2421 = vmatprep.subr.mxu0 0.0
  %2422 = vmatpush1.msra.mxu0 %v2351
  %2423 = vmatprep.mubr.f32.mxu0 %v2287
  %2424 = vmatmul.mubr.f32.gmra.mrb[0].mxu0 %v2286
  %v2425 = vpop.f32.mrb[0].mxu0
  %v2426 = vadd.f32 %v2357, %v2425
  %v2427 = vpop.f32.mrb[0].mxu0
  %2428 = vdwg.mxu0
  %v2429 = vrot.slane %v2426, 4
  %v2430 = vadd.f32 %v2426, %v2429
  %v2431 = vrot.slane %v2430, 2
  %v2432 = vadd.f32 %v2430, %v2431
  %v2433 = vrot.slane %v2432, 1
  %v2434 = vadd.f32 %v2432, %v2433
  %v2435 = vmul.f32 %v2426, %v2426
  %v2436 = vrot.slane %v2435, 4
  %v2437 = vadd.f32 %v2435, %v2436
  %v2438 = vrot.slane %v2437, 2
  %v2439 = vadd.f32 %v2437, %v2438
  %v2440 = vrot.slane %v2439, 1
  %v2441 = vadd.f32 %v2439, %v2440
  %v2442 = vmul.f32 %v2434, 0.125
  %v2443 = vmul.f32 %v2441, 0.125
  %v2444 = vmul.f32 %v2442, %v2442
  %v2445 = vsub.f32 %v2443, %v2444
  %v2446 = vsub.f32 %v2426, %v2442
  %v2447 = vadd.f32 %v2445, 1e-05
  %v2448 = vrsqrt.pop %v2447
  %v2449 = vmul.f32 %v2446, %v2448
  %v2450 = vld [vmem:[%s15] sm:$0x1]
  %v2452 = vlaneseq
  %v2453 = vshrl.u32 %v2452, 7
  %v2454 = vsub.s32 0, %v2453
  %v2455 = vrot.slane %v2450, %v2454
  %v2457 = vmul.f32 %v2449, %v2455
  %v2458 = vld [vmem:[%s16] sm:$0x1]
  %v2460 = vlaneseq
  %v2461 = vshrl.u32 %v2460, 7
  %v2462 = vsub.s32 0, %v2461
  %v2463 = vrot.slane %v2458, %v2462
  %v2465 = vadd.f32 %v2457, %v2463
  %v2466 = vxor.u32 %v2465, 2147483648
  %v2467 = vmul.f32 %v2466, 1.442695
  %v2468 = vpow.pop %v2467
  %v2469 = vadd.f32 %v2468, 1.0
  %v2470 = vrcp.pop %v2469
  %v2471 = vmul.f32 1.0, %v2470
  %v2472 = vmul.f32 %v2465, %v2471
  %v2473 = vld [vmem:[%s17] sm:$0xf]
  %v2474 = vld [vmem:[%s17 + $0x4] sm:$0xf]
  %v2475 = vld [vmem:[%s17 + $0x8] sm:$0xf]
  %v2476 = vld [vmem:[%s17 + $0xc] sm:$0xf]
  %v2477 = vld [vmem:[%s17 + $0x10] sm:$0xf]
  %v2478 = vld [vmem:[%s17 + $0x14] sm:$0xf]
  %v2479 = vld [vmem:[%s17 + $0x18] sm:$0xf]
  %v2480 = vld [vmem:[%s17 + $0x1c] sm:$0xf]
  %v2481 = vld [vmem:[%s17 + $0x20] sm:$0xf]
  %v2482 = vld [vmem:[%s17 + $0x24] sm:$0xf]
  %v2483 = vld [vmem:[%s17 + $0x28] sm:$0xf]
  %v2484 = vld [vmem:[%s17 + $0x2c] sm:$0xf]
  %v2485 = vld [vmem:[%s17 + $0x30] sm:$0xf]
  %v2486 = vld [vmem:[%s17 + $0x34] sm:$0xf]
  %v2487 = vld [vmem:[%s17 + $0x38] sm:$0xf]
  %v2488 = vld [vmem:[%s17 + $0x3c] sm:$0xf]
  %v2489 = vunpack.c.l.bf16 %v2473
  %v2490 = vunpack.c.l.bf16 %v2474
  %v2491 = vunpack.c.l.bf16 %v2475
  %v2492 = vunpack.c.l.bf16 %v2476
  %v2493 = vunpack.c.l.bf16 %v2477
  %v2494 = vunpack.c.l.bf16 %v2478
  %v2495 = vunpack.c.l.bf16 %v2479
  %v2496 = vunpack.c.l.bf16 %v2480
  %v2497 = vunpack.c.l.bf16 %v2481
  %v2498 = vunpack.c.l.bf16 %v2482
  %v2499 = vunpack.c.l.bf16 %v2483
  %v2500 = vunpack.c.l.bf16 %v2484
  %v2501 = vunpack.c.l.bf16 %v2485
  %v2502 = vunpack.c.l.bf16 %v2486
  %v2503 = vunpack.c.l.bf16 %v2487
  %v2504 = vunpack.c.l.bf16 %v2488
  %v2505 = vld [vmem:[%s18] sm:$0x1]
  %v2507 = vlaneseq
  %v2508 = vshrl.u32 %v2507, 7
  %v2509 = vsub.s32 0, %v2508
  %v2510 = vrot.slane %v2505, %v2509
  %2512 = vmatprep.subr.mxu0 0.0
  %2513 = vmatpush1.msra.mxu0 %v2489
  %2514 = vmatprep.subr.mxu0 0.0
  %2515 = vmatpush1.msra.mxu0 %v2490
  %2516 = vmatprep.subr.mxu0 0.0
  %2517 = vmatpush1.msra.mxu0 %v2491
  %2518 = vmatprep.subr.mxu0 0.0
  %2519 = vmatpush1.msra.mxu0 %v2492
  %2520 = vmatprep.subr.mxu0 0.0
  %2521 = vmatpush1.msra.mxu0 %v2493
  %2522 = vmatprep.subr.mxu0 0.0
  %2523 = vmatpush1.msra.mxu0 %v2494
  %2524 = vmatprep.subr.mxu0 0.0
  %2525 = vmatpush1.msra.mxu0 %v2495
  %2526 = vmatprep.subr.mxu0 0.0
  %2527 = vmatpush1.msra.mxu0 %v2496
  %2528 = vmatprep.subr.mxu0 0.0
  %2529 = vmatpush1.msra.mxu0 %v2497
  %2530 = vmatprep.subr.mxu0 0.0
  %2531 = vmatpush1.msra.mxu0 %v2498
  %2532 = vmatprep.subr.mxu0 0.0
  %2533 = vmatpush1.msra.mxu0 %v2499
  %2534 = vmatprep.subr.mxu0 0.0
  %2535 = vmatpush1.msra.mxu0 %v2500
  %2536 = vmatprep.subr.mxu0 0.0
  %2537 = vmatpush1.msra.mxu0 %v2501
  %2538 = vmatprep.subr.mxu0 0.0
  %2539 = vmatpush1.msra.mxu0 %v2502
  %2540 = vmatprep.subr.mxu0 0.0
  %2541 = vmatpush1.msra.mxu0 %v2503
  %2542 = vmatprep.subr.mxu0 0.0
  %2543 = vmatpush1.msra.mxu0 %v2504
  %2544 = vmatprep.subr.mxu0 0.0
  %2545 = vmatpush1.msra.mxu0 0.0
  %2546 = vmatprep.subr.mxu0 0.0
  %2547 = vmatpush1.msra.mxu0 0.0
  %2548 = vmatprep.subr.mxu0 0.0
  %2549 = vmatpush1.msra.mxu0 0.0
  %2550 = vmatprep.subr.mxu0 0.0
  %2551 = vmatpush1.msra.mxu0 0.0
  %2552 = vmatprep.subr.mxu0 0.0
  %2553 = vmatpush1.msra.mxu0 0.0
  %2554 = vmatprep.subr.mxu0 0.0
  %2555 = vmatpush1.msra.mxu0 0.0
  %2556 = vmatprep.subr.mxu0 0.0
  %2557 = vmatpush1.msra.mxu0 0.0
  %2558 = vmatprep.subr.mxu0 0.0
  %2559 = vmatpush1.msra.mxu0 0.0
  %2560 = vmatprep.subr.mxu0 0.0
  %2561 = vmatpush1.msra.mxu0 0.0
  %2562 = vmatprep.subr.mxu0 0.0
  %2563 = vmatpush1.msra.mxu0 0.0
  %2564 = vmatprep.subr.mxu0 0.0
  %2565 = vmatpush1.msra.mxu0 0.0
  %2566 = vmatprep.subr.mxu0 0.0
  %2567 = vmatpush1.msra.mxu0 0.0
  %2568 = vmatprep.subr.mxu0 0.0
  %2569 = vmatpush1.msra.mxu0 0.0
  %2570 = vmatprep.subr.mxu0 0.0
  %2571 = vmatpush1.msra.mxu0 0.0
  %2572 = vmatprep.subr.mxu0 0.0
  %2573 = vmatpush1.msra.mxu0 0.0
  %2574 = vmatprep.subr.mxu0 0.0
  %2575 = vmatpush1.msra.mxu0 0.0
  %2576 = vmatprep.mubr.f32.mxu0 0.0
  %2577 = vmatmul.mubr.f32.gmra.mrb[0].mxu0 %v2472
  %v2578 = vpop.f32.mrb[0].mxu0
  %v2579 = vadd.f32 %v2510, %v2578
  %v2580 = vpop.f32.mrb[0].mxu0
  %2581 = vdwg.mxu0
  %v2582 = vmul.f32 %v2579, 1.442695
  %v2583 = vpow.pop %v2582
  %v2584 = vld [vmem:[%s19] sm:$0xff]
  %2586 = vrot.lane.b32.xlu0 %v2584, 64
  %v2587 = vpop.permute.xlu0 %2586
  %v2589 = vmul.f32 %v2583, %v2587
  %2591 = vrot.lane.b32.xlu0 %v2589, 64
  %v2592 = vpop.permute.xlu0 %2591
  %v2594 = vadd.f32 %v2579, %v2592
  %2595 = vst [vmem:[%s20] sm:$0xff] %v2579
  %vm2596 = vcmask 523264
  %2597 = vst.msk [vmem:[%s20 + $0x8] sm:$0xff] %vm2596, %v2594
  // Predicated region
  $region82: #{encoder_forward.1} parent=0 // pred_check
    _
  $region83: #{encoder_forward.1} parent=0 // pred_check_branch
    %2599 = sbr.rel (0) target = $region85
  $region84: #{encoder_forward.1} parent=0 // pred_region
    _
  $region85: #{encoder_forward.1} parent=0 // pred_fallthru
    _
  // Predicated region
  $region86: #{encoder_forward.1} parent=0 // pred_check
    _
  $region87: #{encoder_forward.1} parent=0 // pred_check_branch
    %2601 = sbr.rel (0) target = $region89
  $region88: #{encoder_forward.1} parent=0 // pred_region
    _
  $region89: #{encoder_forward.1} parent=0 // pred_fallthru
    _

</llo_original>
